<compile_context>
chip_gen: v7x
topology: tpu7x:2x2x1
jax: 0.10.0
libtpu: 0.0.40
codegen_flags: <defaults>
</compile_context>

<pallas_src>
import functools

import jax
import jax.numpy as jnp
from jax.experimental import pallas as pl
from jax.experimental.pallas import tpu as pltpu


# ---------------------------------------------------------------------------
# Kernel
# ---------------------------------------------------------------------------
def actor_kernel(obs_ref, wt_ref, bt_ref, g_ref, be_ref,
                 w1_ref, b1_ref, w2_ref, b2_ref, w3_ref, b3_ref,
                 mu_ref, acc_ref, *, feature_dim, eps):
    k = pl.program_id(1)

    # ----- trunk Linear, K-tiled accumulation (bf16 operands, f32 acc) -----
    @pl.when(k == 0)
    def _():
        # Fold the trunk bias into the accumulator init (saves the finalize add).
        acc_ref[...] = jnp.broadcast_to(bt_ref[...], acc_ref.shape)

    acc_ref[...] += jnp.dot(obs_ref[...], wt_ref[...],
                            preferred_element_type=jnp.float32)

    # ----- finalize on the last K step -----
    @pl.when(k == pl.num_programs(1) - 1)
    def _():
        h = acc_ref[...]                                    # f32, padded lanes == 0

        # Fused single-pass LayerNorm statistics over the TRUE feature_dim.
        inv_n = 1.0 / float(feature_dim)
        s1 = jnp.sum(h, axis=-1, keepdims=True)
        s2 = jnp.sum(h * h, axis=-1, keepdims=True)
        mean = s1 * inv_n
        var = s2 * inv_n - mean * mean                      # biased var (PyTorch LN)
        h = (h - mean) * jax.lax.rsqrt(var + eps)           # rsqrt -> EUP slot
        h = h * g_ref[...] + be_ref[...]                    # gamma/beta pad == 0
        h = jnp.tanh(h)

        # ----- policy MLP: Linear -> ReLU -> Linear -> ReLU -> Linear -----
        h = jnp.dot(h.astype(jnp.bfloat16), w1_ref[...],
                    preferred_element_type=jnp.float32) + b1_ref[...]
        h = jnp.maximum(h, 0.0)
        h = jnp.dot(h.astype(jnp.bfloat16), w2_ref[...],
                    preferred_element_type=jnp.float32) + b2_ref[...]
        h = jnp.maximum(h, 0.0)
        mu = jnp.dot(h.astype(jnp.bfloat16), w3_ref[...],
                     preferred_element_type=jnp.float32) + b3_ref[...]

        mu_ref[...] = jnp.tanh(mu)                          # lane-dense f32 store


# ---------------------------------------------------------------------------
# Wrapper
# ---------------------------------------------------------------------------
def _round_up(x, m):
    return (x + m - 1) // m * m


def _pad2(a, rows, cols, dtype=None):
    a = jnp.pad(a, ((0, rows - a.shape[0]), (0, cols - a.shape[1])))
    return a if dtype is None else a.astype(dtype)


def actor_forward(obs, std_scalar, params, *, tb=64, tk=128):
    """Fused Actor forward. Returns (mu, std) — TruncatedNormal parameters."""
    B, K = obs.shape
    F = params["wt"].shape[1]
    H = params["w1"].shape[1]
    A = params["w3"].shape[1]

    Bp = _round_up(B, tb)
    Kp = _round_up(K, tk)
    Fp = _round_up(F, 128)
    Hp = _round_up(H, 128)
    Ap = _round_up(A, 128)

    bf16 = jnp.bfloat16
    f32 = jnp.float32

    # Zero padding keeps all padded lanes mathematically inert.
    obs_p = _pad2(obs, Bp, Kp, bf16)
    wt_p = _pad2(params["wt"], Kp, Fp, bf16)
    bt_p = _pad2(params["bt"], 1, Fp, f32)
    g_p = _pad2(params["ln_g"], 1, Fp, f32)     # gamma pad = 0
    be_p = _pad2(params["ln_b"], 1, Fp, f32)
    w1_p = _pad2(params["w1"], Fp, Hp, bf16)
    b1_p = _pad2(params["b1"], 1, Hp, f32)
    w2_p = _pad2(params["w2"], Hp, Hp, bf16)
    b2_p = _pad2(params["b2"], 1, Hp, f32)
    w3_p = _pad2(params["w3"], Hp, Ap, bf16)
    b3_p = _pad2(params["b3"], 1, Ap, f32)

    grid = (Bp // tb, Kp // tk)

    const = lambda shape: pl.BlockSpec(shape, lambda i, k: (0, 0))

    # Rough VMEM budget (double-buffer everything conservatively) + headroom.
    vmem_bytes = (
        2 * tb * tk * 2                                   # obs tiles (bf16)
        + 2 * tk * Fp * 2                                 # trunk-W K-tiles (bf16)
        + 2 * (Fp * Hp + Hp * Hp + Hp * Ap) * 2           # resident policy weights
        + 2 * (3 * Fp + 2 * Hp + Ap) * 4                  # biases / LN params (f32)
        + 2 * tb * Ap * 4                                 # mu output tiles
        + tb * Fp * 4                                     # accumulator scratch
        + (4 << 20)
    )

    cost = pl.CostEstimate(
        flops=2 * Bp * (Kp * Fp + Fp * Hp + Hp * Hp + Hp * Ap),
        transcendentals=Bp * (Fp + Ap + 1),
        bytes_accessed=(obs_p.size * 2 + wt_p.size * 2
                        + (w1_p.size + w2_p.size + w3_p.size) * 2
                        + (bt_p.size + g_p.size + be_p.size
                           + b1_p.size + b2_p.size + b3_p.size) * 4
                        + Bp * Ap * 4),
    )

    kernel = functools.partial(actor_kernel, feature_dim=F, eps=1e-5)

    mu_p = pl.pallas_call(
        kernel,
        out_shape=jax.ShapeDtypeStruct((Bp, Ap), jnp.float32),
        grid=grid,
        in_specs=[
            pl.BlockSpec((tb, tk), lambda i, k: (i, k)),    # obs
            pl.BlockSpec((tk, Fp), lambda i, k: (k, 0)),    # trunk W (K-tiled)
            const((1, Fp)),                                 # trunk b
            const((1, Fp)),                                 # LN gamma
            const((1, Fp)),                                 # LN beta
            const((Fp, Hp)), const((1, Hp)),                # policy W1, b1
            const((Hp, Hp)), const((1, Hp)),                # policy W2, b2
            const((Hp, Ap)), const((1, Ap)),                # policy W3, b3
        ],
        out_specs=pl.BlockSpec((tb, Ap), lambda i, k: (i, 0)),
        scratch_shapes=[pltpu.VMEM((tb, Fp), jnp.float32)],
        compiler_params=pltpu.CompilerParams(
            dimension_semantics=("parallel", "arbitrary"),
            vmem_limit_bytes=int(vmem_bytes),
        ),
        cost_estimate=cost,
    )(obs_p, wt_p, bt_p, g_p, be_p,
      w1_p, b1_p, w2_p, b2_p, w3_p, b3_p)

    mu = mu_p[:B, :A]
    std = jnp.full((B, A), std_scalar, dtype=mu.dtype)       # constant fill: wrapper-side
    return mu, std


# ---------------------------------------------------------------------------
# Parameters (shapes match the PyTorch module; weights stored [in, out])
# ---------------------------------------------------------------------------
def init_params(key, repr_dim, feature_dim, hidden_dim, action_dim):
    ks = jax.random.split(key, 8)
    f32 = jnp.float32
    return {
        "wt": 0.1 * jax.random.normal(ks[0], (repr_dim, feature_dim), f32),
        "bt": 0.01 * jax.random.normal(ks[1], (1, feature_dim), f32),
        "ln_g": jnp.ones((1, feature_dim), f32),
        "ln_b": jnp.zeros((1, feature_dim), f32),
        "w1": 0.1 * jax.random.normal(ks[2], (feature_dim, hidden_dim), f32),
        "b1": 0.01 * jax.random.normal(ks[3], (1, hidden_dim), f32),
        "w2": 0.1 * jax.random.normal(ks[4], (hidden_dim, hidden_dim), f32),
        "b2": 0.01 * jax.random.normal(ks[5], (1, hidden_dim), f32),
        "w3": 0.1 * jax.random.normal(ks[6], (hidden_dim, action_dim), f32),
        "b3": 0.01 * jax.random.normal(ks[7], (1, action_dim), f32),
    }


if __name__ == "__main__":
    # Small shapes consistent with the module's forward (multiple tiles on each grid axis).
    B = 128
    repr_dim = 256
    feature_dim = 50
    hidden_dim = 128
    action_shape = (6,)
    std_value = 0.2

    key = jax.random.PRNGKey(0)
    k_obs, k_par = jax.random.split(key)
    obs = jax.random.normal(k_obs, (B, repr_dim), jnp.float32)
    params = init_params(k_par, repr_dim, feature_dim, hidden_dim, action_shape[0])

    mu, std = actor_forward(obs, std_value, params)
    jax.block_until_ready((mu, std))

    # ---- reference with matching bf16 matmul operands (tight check) ----
    def ref_bf16(obs, p):
        bf = jnp.bfloat16
        h = jnp.dot(obs.astype(bf), p["wt"].astype(bf),
                    preferred_element_type=jnp.float32) + p["bt"]
        m = h.mean(-1, keepdims=True)
        v = ((h - m) ** 2).mean(-1, keepdims=True)
        h = (h - m) * jax.lax.rsqrt(v + 1e-5) * p["ln_g"] + p["ln_b"]
        h = jnp.tanh(h)
        h = jnp.maximum(jnp.dot(h.astype(bf), p["w1"].astype(bf),
                                preferred_element_type=jnp.float32) + p["b1"], 0.0)
        h = jnp.maximum(jnp.dot(h.astype(bf), p["w2"].astype(bf),
                                preferred_element_type=jnp.float32) + p["b2"], 0.0)
        return jnp.tanh(jnp.dot(h.astype(bf), p["w3"].astype(bf),
                                preferred_element_type=jnp.float32) + p["b3"])

    # ---- pure-fp32 reference (loose check, proves module semantics) ----
    def ref_f32(obs, p):
        h = obs @ p["wt"] + p["bt"]
        m = h.mean(-1, keepdims=True)
        v = ((h - m) ** 2).mean(-1, keepdims=True)
        h = (h - m) / jnp.sqrt(v + 1e-5) * p["ln_g"] + p["ln_b"]
        h = jnp.tanh(h)
        h = jnp.maximum(h @ p["w1"] + p["b1"], 0.0)
        h = jnp.maximum(h @ p["w2"] + p["b2"], 0.0)
        return jnp.tanh(h @ p["w3"] + p["b3"])

    mu_bf = ref_bf16(obs, params)
    mu_fp = ref_f32(obs, params)
    assert jnp.allclose(mu, mu_bf, atol=5e-3), "mu mismatch vs bf16-matched reference"
    assert jnp.allclose(mu, mu_fp, atol=5e-2), "mu mismatch vs fp32 reference"
    assert jnp.allclose(std, jnp.full_like(mu, std_value)), "std mismatch"

    print("KERNEL_OK")
</pallas_src>

<mosaic_0001>
module attributes {stable_mosaic.version = 11 : i64} {
  func.func @actor_kernel(%arg0: i32, %arg1: i32, %arg2: memref<64x128xbf16, #tpu.memory_space<vmem>>, %arg3: memref<128x128xbf16, #tpu.memory_space<vmem>>, %arg4: memref<1x128xf32, #tpu.memory_space<vmem>>, %arg5: memref<1x128xf32, #tpu.memory_space<vmem>>, %arg6: memref<1x128xf32, #tpu.memory_space<vmem>>, %arg7: memref<128x128xbf16, #tpu.memory_space<vmem>>, %arg8: memref<1x128xf32, #tpu.memory_space<vmem>>, %arg9: memref<128x128xbf16, #tpu.memory_space<vmem>>, %arg10: memref<1x128xf32, #tpu.memory_space<vmem>>, %arg11: memref<128x128xbf16, #tpu.memory_space<vmem>>, %arg12: memref<1x128xf32, #tpu.memory_space<vmem>>, %arg13: memref<64x128xf32, #tpu.memory_space<vmem>>, %arg14: memref<64x128xf32, #tpu.memory_space<vmem>>) attributes {dimension_semantics = [#tpu.dimension_semantics<parallel>, #tpu.dimension_semantics<arbitrary>], iteration_bounds = array<i64: 2, 2>, scalar_prefetch = 0 : i64, scratch_operands = 1 : i64, tpu.core_type = #tpu.core_type<tc>, window_params = [{transform_indices = @transform_0, window_bounds = array<i64: 64, 128>}, {transform_indices = @transform_1, window_bounds = array<i64: 128, 128>}, {pipeline_mode = #tpu.pipeline_mode<synchronous>, transform_indices = @transform_2, window_bounds = array<i64: 1, 128>}, {pipeline_mode = #tpu.pipeline_mode<synchronous>, transform_indices = @transform_3, window_bounds = array<i64: 1, 128>}, {pipeline_mode = #tpu.pipeline_mode<synchronous>, transform_indices = @transform_4, window_bounds = array<i64: 1, 128>}, {pipeline_mode = #tpu.pipeline_mode<synchronous>, transform_indices = @transform_5, window_bounds = array<i64: 128, 128>}, {pipeline_mode = #tpu.pipeline_mode<synchronous>, transform_indices = @transform_6, window_bounds = array<i64: 1, 128>}, {pipeline_mode = #tpu.pipeline_mode<synchronous>, transform_indices = @transform_7, window_bounds = array<i64: 128, 128>}, {pipeline_mode = #tpu.pipeline_mode<synchronous>, transform_indices = @transform_8, window_bounds = array<i64: 1, 128>}, {pipeline_mode = #tpu.pipeline_mode<synchronous>, transform_indices = @transform_9, window_bounds = array<i64: 128, 128>}, {pipeline_mode = #tpu.pipeline_mode<synchronous>, transform_indices = @transform_10, window_bounds = array<i64: 1, 128>}, {transform_indices = @transform_11, window_bounds = array<i64: 64, 128>}]} {
    %c0_i32 = arith.constant 0 : i32
    %0 = arith.cmpi eq, %arg1, %c0_i32 : i32
    %1 = arith.extui %0 : i1 to i32
    %c0_i32_0 = arith.constant 0 : i32
    %2 = arith.cmpi ne, %1, %c0_i32_0 : i32
    scf.if %2 {
      %c0_9 = arith.constant 0 : index
      %c0_10 = arith.constant 0 : index
      %12 = vector.load %arg4[%c0_9, %c0_10] : memref<1x128xf32, #tpu.memory_space<vmem>>, vector<1x128xf32>
      %13 = vector.shape_cast %12 : vector<1x128xf32> to vector<1x128xf32>
      %14 = vector.broadcast %13 : vector<1x128xf32> to vector<64x128xf32>
      %c0_11 = arith.constant 0 : index
      %c0_12 = arith.constant 0 : index
      %15 = vector.load %arg14[%c0_11, %c0_12] : memref<64x128xf32, #tpu.memory_space<vmem>>, vector<64x128xf32>
      tpu.vector_store %arg14[%c0_11, %c0_12], %14 {strides = array<i32>} : memref<64x128xf32, #tpu.memory_space<vmem>>, vector<64x128xf32>,
    } else {
    }
    %c0 = arith.constant 0 : index
    %c0_1 = arith.constant 0 : index
    %3 = vector.load %arg14[%c0, %c0_1] : memref<64x128xf32, #tpu.memory_space<vmem>>, vector<64x128xf32>
    %c0_2 = arith.constant 0 : index
    %c0_3 = arith.constant 0 : index
    %4 = vector.load %arg2[%c0_2, %c0_3] : memref<64x128xbf16, #tpu.memory_space<vmem>>, vector<64x128xbf16>
    %c0_4 = arith.constant 0 : index
    %c0_5 = arith.constant 0 : index
    %5 = vector.load %arg3[%c0_4, %c0_5] : memref<128x128xbf16, #tpu.memory_space<vmem>>, vector<128x128xbf16>
    %cst = arith.constant dense<0.000000e+00> : vector<64x128xf32>
    %6 = tpu.matmul %4, %5, %cst {dimension_numbers = #tpu.dot_dimension_numbers<[1], [0], [0], [1], [0, 0, 1, 1], [], []>} : vector<64x128xbf16>, vector<128x128xbf16>, vector<64x128xf32> -> vector<64x128xf32>
    %7 = arith.addf %3, %6 : vector<64x128xf32>
    %c0_6 = arith.constant 0 : index
    %c0_7 = arith.constant 0 : index
    %8 = vector.load %arg14[%c0_6, %c0_7] : memref<64x128xf32, #tpu.memory_space<vmem>>, vector<64x128xf32>
    tpu.vector_store %arg14[%c0_6, %c0_7], %7 {strides = array<i32>} : memref<64x128xf32, #tpu.memory_space<vmem>>, vector<64x128xf32>,
    %c1_i32 = arith.constant 1 : i32
    %9 = arith.cmpi eq, %arg1, %c1_i32 : i32
    %10 = arith.extui %9 : i1 to i32
    %c0_i32_8 = arith.constant 0 : i32
    %11 = arith.cmpi ne, %10, %c0_i32_8 : i32
    scf.if %11 {
      %c0_9 = arith.constant 0 : index
      %c0_10 = arith.constant 0 : index
      %12 = vector.load %arg14[%c0_9, %c0_10] : memref<64x128xf32, #tpu.memory_space<vmem>>, vector<64x128xf32>
      %cst_11 = arith.constant dense<0.000000e+00> : vector<64xf32>
      %13 = vector.multi_reduction <add>, %12, %cst_11 [1] : vector<64x128xf32> to vector<64xf32>
      %14 = vector.shape_cast %13 : vector<64xf32> to vector<64x1xf32>
      %15 = arith.mulf %12, %12 : vector<64x128xf32>
      %cst_12 = arith.constant dense<0.000000e+00> : vector<64xf32>
      %16 = vector.multi_reduction <add>, %15, %cst_12 [1] : vector<64x128xf32> to vector<64xf32>
      %17 = vector.shape_cast %16 : vector<64xf32> to vector<64x1xf32>
      %cst_13 = arith.constant 2.000000e-02 : f32
      %18 = vector.broadcast %cst_13 : f32 to vector<64x1xf32>
      %19 = arith.mulf %14, %18 : vector<64x1xf32>
      %cst_14 = arith.constant 2.000000e-02 : f32
      %20 = vector.broadcast %cst_14 : f32 to vector<64x1xf32>
      %21 = arith.mulf %17, %20 : vector<64x1xf32>
      %22 = arith.mulf %19, %19 : vector<64x1xf32>
      %23 = arith.subf %21, %22 : vector<64x1xf32>
      %24 = vector.broadcast %19 : vector<64x1xf32> to vector<64x128xf32>
      %25 = arith.subf %12, %24 : vector<64x128xf32>
      %cst_15 = arith.constant 9.99999974E-6 : f32
      %26 = vector.broadcast %cst_15 : f32 to vector<64x1xf32>
      %27 = arith.addf %23, %26 : vector<64x1xf32>
      %28 = math.rsqrt %27 : vector<64x1xf32>
      %29 = vector.broadcast %28 : vector<64x1xf32> to vector<64x128xf32>
      %30 = arith.mulf %25, %29 : vector<64x128xf32>
      %c0_16 = arith.constant 0 : index
      %c0_17 = arith.constant 0 : index
      %31 = vector.load %arg5[%c0_16, %c0_17] : memref<1x128xf32, #tpu.memory_space<vmem>>, vector<1x128xf32>
      %32 = vector.broadcast %31 : vector<1x128xf32> to vector<64x128xf32>
      %33 = arith.mulf %30, %32 : vector<64x128xf32>
      %c0_18 = arith.constant 0 : index
      %c0_19 = arith.constant 0 : index
      %34 = vector.load %arg6[%c0_18, %c0_19] : memref<1x128xf32, #tpu.memory_space<vmem>>, vector<1x128xf32>
      %35 = vector.broadcast %34 : vector<1x128xf32> to vector<64x128xf32>
      %36 = arith.addf %33, %35 : vector<64x128xf32>
      %37 = math.tanh %36 : vector<64x128xf32>
      %38 = arith.truncf %37 : vector<64x128xf32> to vector<64x128xbf16>
      %c0_20 = arith.constant 0 : index
      %c0_21 = arith.constant 0 : index
      %39 = vector.load %arg7[%c0_20, %c0_21] : memref<128x128xbf16, #tpu.memory_space<vmem>>, vector<128x128xbf16>
      %cst_22 = arith.constant dense<0.000000e+00> : vector<64x128xf32>
      %40 = tpu.matmul %38, %39, %cst_22 {dimension_numbers = #tpu.dot_dimension_numbers<[1], [0], [0], [1], [0, 0, 1, 1], [], []>} : vector<64x128xbf16>, vector<128x128xbf16>, vector<64x128xf32> -> vector<64x128xf32>
      %c0_23 = arith.constant 0 : index
      %c0_24 = arith.constant 0 : index
      %41 = vector.load %arg8[%c0_23, %c0_24] : memref<1x128xf32, #tpu.memory_space<vmem>>, vector<1x128xf32>
      %42 = vector.broadcast %41 : vector<1x128xf32> to vector<64x128xf32>
      %43 = arith.addf %40, %42 : vector<64x128xf32>
      %cst_25 = arith.constant 0.000000e+00 : f32
      %44 = vector.broadcast %cst_25 : f32 to vector<64x128xf32>
      %45 = arith.maximumf %43, %44 : vector<64x128xf32>
      %46 = arith.truncf %45 : vector<64x128xf32> to vector<64x128xbf16>
      %c0_26 = arith.constant 0 : index
      %c0_27 = arith.constant 0 : index
      %47 = vector.load %arg9[%c0_26, %c0_27] : memref<128x128xbf16, #tpu.memory_space<vmem>>, vector<128x128xbf16>
      %cst_28 = arith.constant dense<0.000000e+00> : vector<64x128xf32>
      %48 = tpu.matmul %46, %47, %cst_28 {dimension_numbers = #tpu.dot_dimension_numbers<[1], [0], [0], [1], [0, 0, 1, 1], [], []>} : vector<64x128xbf16>, vector<128x128xbf16>, vector<64x128xf32> -> vector<64x128xf32>
      %c0_29 = arith.constant 0 : index
      %c0_30 = arith.constant 0 : index
      %49 = vector.load %arg10[%c0_29, %c0_30] : memref<1x128xf32, #tpu.memory_space<vmem>>, vector<1x128xf32>
      %50 = vector.broadcast %49 : vector<1x128xf32> to vector<64x128xf32>
      %51 = arith.addf %48, %50 : vector<64x128xf32>
      %cst_31 = arith.constant 0.000000e+00 : f32
      %52 = vector.broadcast %cst_31 : f32 to vector<64x128xf32>
      %53 = arith.maximumf %51, %52 : vector<64x128xf32>
      %54 = arith.truncf %53 : vector<64x128xf32> to vector<64x128xbf16>
      %c0_32 = arith.constant 0 : index
      %c0_33 = arith.constant 0 : index
      %55 = vector.load %arg11[%c0_32, %c0_33] : memref<128x128xbf16, #tpu.memory_space<vmem>>, vector<128x128xbf16>
      %cst_34 = arith.constant dense<0.000000e+00> : vector<64x128xf32>
      %56 = tpu.matmul %54, %55, %cst_34 {dimension_numbers = #tpu.dot_dimension_numbers<[1], [0], [0], [1], [0, 0, 1, 1], [], []>} : vector<64x128xbf16>, vector<128x128xbf16>, vector<64x128xf32> -> vector<64x128xf32>
      %c0_35 = arith.constant 0 : index
      %c0_36 = arith.constant 0 : index
      %57 = vector.load %arg12[%c0_35, %c0_36] : memref<1x128xf32, #tpu.memory_space<vmem>>, vector<1x128xf32>
      %58 = vector.broadcast %57 : vector<1x128xf32> to vector<64x128xf32>
      %59 = arith.addf %56, %58 : vector<64x128xf32>
      %60 = math.tanh %59 : vector<64x128xf32>
      %c0_37 = arith.constant 0 : index
      %c0_38 = arith.constant 0 : index
      %61 = vector.load %arg13[%c0_37, %c0_38] : memref<64x128xf32, #tpu.memory_space<vmem>>, vector<64x128xf32>
      tpu.vector_store %arg13[%c0_37, %c0_38], %60 {strides = array<i32>} : memref<64x128xf32, #tpu.memory_space<vmem>>, vector<64x128xf32>,
    } else {
    }
    return
  }
  func.func @transform_0(%arg0: i32, %arg1: i32) -> (i32, i32) {
    %c0_i32 = arith.constant 0 : i32
    return %arg0, %arg1 : i32, i32
  }
  func.func @transform_1(%arg0: i32, %arg1: i32) -> (i32, i32) {
    %c0_i32 = arith.constant 0 : i32
    %c0_i32_0 = arith.constant 0 : i32
    return %arg1, %c0_i32 : i32, i32
  }
  func.func @transform_2(%arg0: i32, %arg1: i32) -> (i32, i32) {
    %c0_i32 = arith.constant 0 : i32
    %c0_i32_0 = arith.constant 0 : i32
    %c0_i32_1 = arith.constant 0 : i32
    return %c0_i32, %c0_i32_0 : i32, i32
  }
  func.func @transform_3(%arg0: i32, %arg1: i32) -> (i32, i32) {
    %c0_i32 = arith.constant 0 : i32
    %c0_i32_0 = arith.constant 0 : i32
    %c0_i32_1 = arith.constant 0 : i32
    return %c0_i32, %c0_i32_0 : i32, i32
  }
  func.func @transform_4(%arg0: i32, %arg1: i32) -> (i32, i32) {
    %c0_i32 = arith.constant 0 : i32
    %c0_i32_0 = arith.constant 0 : i32
    %c0_i32_1 = arith.constant 0 : i32
    return %c0_i32, %c0_i32_0 : i32, i32
  }
  func.func @transform_5(%arg0: i32, %arg1: i32) -> (i32, i32) {
    %c0_i32 = arith.constant 0 : i32
    %c0_i32_0 = arith.constant 0 : i32
    %c0_i32_1 = arith.constant 0 : i32
    return %c0_i32, %c0_i32_0 : i32, i32
  }
  func.func @transform_6(%arg0: i32, %arg1: i32) -> (i32, i32) {
    %c0_i32 = arith.constant 0 : i32
    %c0_i32_0 = arith.constant 0 : i32
    %c0_i32_1 = arith.constant 0 : i32
    return %c0_i32, %c0_i32_0 : i32, i32
  }
  func.func @transform_7(%arg0: i32, %arg1: i32) -> (i32, i32) {
    %c0_i32 = arith.constant 0 : i32
    %c0_i32_0 = arith.constant 0 : i32
    %c0_i32_1 = arith.constant 0 : i32
    return %c0_i32, %c0_i32_0 : i32, i32
  }
  func.func @transform_8(%arg0: i32, %arg1: i32) -> (i32, i32) {
    %c0_i32 = arith.constant 0 : i32
    %c0_i32_0 = arith.constant 0 : i32
    %c0_i32_1 = arith.constant 0 : i32
    return %c0_i32, %c0_i32_0 : i32, i32
  }
  func.func @transform_9(%arg0: i32, %arg1: i32) -> (i32, i32) {
    %c0_i32 = arith.constant 0 : i32
    %c0_i32_0 = arith.constant 0 : i32
    %c0_i32_1 = arith.constant 0 : i32
    return %c0_i32, %c0_i32_0 : i32, i32
  }
  func.func @transform_10(%arg0: i32, %arg1: i32) -> (i32, i32) {
    %c0_i32 = arith.constant 0 : i32
    %c0_i32_0 = arith.constant 0 : i32
    %c0_i32_1 = arith.constant 0 : i32
    return %c0_i32, %c0_i32_0 : i32, i32
  }
  func.func @transform_11(%arg0: i32, %arg1: i32) -> (i32, i32) {
    %c0_i32 = arith.constant 0 : i32
    %c0_i32_0 = arith.constant 0 : i32
    return %arg0, %c0_i32 : i32, i32
  }
}

</mosaic_0001>

<llo_original>
// kernel: tpu_custom_call.1
$region0: #{tpu_custom_call.1}
  #allocation0 [shape = 'u32[]', space=smem, size = 0x4, offset = 0x4, fixed_abs, tag = 'smem constant byte address 0x4 - core index']
  #allocation1 [shape = 'u32[144,128]{1,0:T(1,128)}', space=vmem, size = 0x12000, scoped, tag = 'internal scratch']
  #allocation2 [shape = 'f32[64,128]{1,0:T(8,128)}', space=vmem, size = 0x8000, scoped, tag = 'scratch operand']
  %s0 = inlined_call_operand.hbm [shape: bf16[128,256], index: 0, kind: input, shape index: {}]
  %s1 = inlined_call_operand.hbm [shape: bf16[256,128], index: 1, kind: input, shape index: {}]
  %s2 = inlined_call_operand.vmem [shape: f32[1,128], index: 2, kind: input, shape index: {}]
  %s3 = inlined_call_operand.vmem [shape: f32[1,128], index: 3, kind: input, shape index: {}]
  %s4 = inlined_call_operand.vmem [shape: f32[1,128], index: 4, kind: input, shape index: {}]
  %s5 = inlined_call_operand.hbm [shape: bf16[128,128], index: 5, kind: input, shape index: {}]
  %s6 = inlined_call_operand.vmem [shape: f32[1,128], index: 6, kind: input, shape index: {}]
  %s7 = inlined_call_operand.hbm [shape: bf16[128,128], index: 7, kind: input, shape index: {}]
  %s8 = inlined_call_operand.vmem [shape: f32[1,128], index: 8, kind: input, shape index: {}]
  %s9 = inlined_call_operand.hbm [shape: bf16[128,128], index: 9, kind: input, shape index: {}]
  %s10 = inlined_call_operand.vmem [shape: f32[1,128], index: 10, kind: input, shape index: {}]
  %s11 = inlined_call_operand.hbm [shape: f32[128,128], index: 11, kind: output, shape index: {}]
  %s12 = sld [smem:[#allocation0]]
  $region105: #{tpu_custom_call.1} parent=0
    _
  %s14 = ssub.s32 1, %s12
  %s15 = scalar_select 0, %s14, %s12
  $region1: #{tpu_custom_call.1} parent=0
    #allocation3 [shape = 'u8[32768]{0}', space=vmem, size = 0x8000, scoped, tag = 'input window, operand 0']
    #allocation4 [shape = 's32[2]{0}', space=sflag, size = 0x8, scoped, tag = 'scoped memory for tpu_custom_call.1']
    #allocation5 [shape = 's32[2]{0}', space=sflag, size = 0x8, scoped, tag = 'scoped memory for tpu_custom_call.1']
    #allocation6 [shape = 'u8[65536]{0}', space=vmem, size = 0x10000, scoped, tag = 'input window, operand 1']
    #allocation7 [shape = 's32[2]{0}', space=sflag, size = 0x8, scoped, tag = 'scoped memory for tpu_custom_call.1']
    #allocation8 [shape = 'u8[32768]{0}', space=vmem, size = 0x8000, scoped, tag = 'input window, operand 5, single buffered']
    #allocation9 [shape = 'u8[32768]{0}', space=vmem, size = 0x8000, scoped, tag = 'input window, operand 7, single buffered']
    #allocation10 [shape = 's32[1]{0}', space=sflag, size = 0x4, scoped, tag = 'scoped memory for tpu_custom_call.1']
    #allocation11 [shape = 'u8[32768]{0}', space=vmem, size = 0x8000, scoped, tag = 'input window, operand 9, single buffered']
    #allocation12 [shape = 'u8[65536]{0}', space=vmem, size = 0x10000, scoped, tag = 'output window, operand 0']
    %16 = vsyncpa [#allocation4], 0
    %s17 = scalar_lea.sflag [#allocation4], 1
    %18 = vsyncpa %s17, 0
    %19 = vsyncpa [#allocation7], 0
    %s20 = scalar_lea.sflag [#allocation7], 1
    %21 = vsyncpa %s20, 0
    %22 = vsyncpa [#allocation10], 0
    %23 = vsyncpa [#allocation5], 0
    %s24 = scalar_lea.sflag [#allocation5], 1
    %25 = vsyncpa %s24, 0
    loop: start=0, step=1, limit=6
    $region2: #{tpu_custom_call.1} parent=1 // loop_pre_header
      _
    $region3: #{tpu_custom_call.1} parent=1 // loop_header
      %s27 = sphi 0, %s31
      %p28 = scmp.ge.s32.totalorder %s27, 6
      %s34 = sphi 0, %s46
      %s35 = sphi 0, %s42
      %s36 = sphi 0, %s34
      %s37 = sphi 0, %s35
      %s38 = sphi 0, %s36
      %s39 = sphi 0, %s37
      %s51 = sphi 0, %s53
      %s54 = sphi 0, %s51
      %s55 = sphi 0, %s54
      %s71 = sphi 0, %s55
      %s77 = sphi 0, %s79
      %s80 = sphi 0, %s77
      %s81 = sphi 0, %s80
      %s97 = sphi 0, %s81
      %s101 = sphi 0, %s101
      %s103 = sphi 0, %s101
      %s104 = sphi 0, %s103
      %s118 = sphi 0, %s104
      %s122 = sphi 0, %s122
      %s124 = sphi 0, %s122
      %s125 = sphi 0, %s124
      %s139 = sphi 0, %s125
      %s143 = sphi 0, %s143
      %s145 = sphi 0, %s143
      %s146 = sphi 0, %s145
      %s160 = sphi 0, %s146
      %s164 = sphi 0, %s164
      %s166 = sphi 0, %s164
      %s167 = sphi 0, %s166
      %s181 = sphi 0, %s167
      %s185 = sphi 0, %s185
      %s187 = sphi 0, %s185
      %s188 = sphi 0, %s187
      %s202 = sphi 0, %s188
      %s206 = sphi 0, %s206
      %s208 = sphi 0, %s206
      %s209 = sphi 0, %s208
      %s223 = sphi 0, %s209
      %s227 = sphi 0, %s227
      %s229 = sphi 0, %s227
      %s230 = sphi 0, %s229
      %s244 = sphi 0, %s230
      %s248 = sphi 0, %s248
      %s250 = sphi 0, %s248
      %s251 = sphi 0, %s250
      %s265 = sphi 0, %s251
      %s269 = sphi 0, %s269
      %s271 = sphi 0, %s269
      %s272 = sphi 0, %s271
      %s286 = sphi 0, %s272
      %s292 = sphi 0, %s294
      %s295 = sphi 0, %s292
      %s296 = sphi 0, %s295
      %s312 = sphi 0, %s296
    $region4: #{tpu_custom_call.1} parent=1 // loop_header_branch
      %30 = sbr.rel (%p28) target = $region8
    $region5: #{tpu_custom_call.1} parent=1 // loop_body
      %s32 = ssub.s32 %s27, 1
      %s33 = ssub.s32 %s27, 2
      %s40 = sadd.s32 1, %s35
      %p41 = scmp.ge.s32.totalorder %s40, 2
      %s42 = scalar_select %p41, 0, %s40
      %s43 = sadd.s32 1, %s34
      %s44 = scalar_select %p41, %s43, %s34
      %p45 = scmp.ge.s32.totalorder %s44, 2
      %s46 = scalar_select %p45, 0, %s44
      %s47 = ssub.s32 %s34, %s46
      %s48 = ssub.s32 %s35, %s42
      %s49 = sor.u32 %s47, %s48
      %p50 = scmp.eq.s32.totalorder %s49, 0
      %s52 = sadd.s32 %s51, 1
      %s53 = scalar_select %p50, %s51, %s52
      %p56 = pneg %p50
      %p57 = scmp.eq.s32.totalorder %s27, 3
      %p58 = por %p56, %p57
      %p59 = scmp.ne.s32.totalorder %s51, %s54
      %p60 = scmp.eq.s32.totalorder %s27, 0
      %p61 = por %p59, %p60
      %p62 = scmp.ne.s32.totalorder %s51, %s54
      %p63 = scmp.eq.s32.totalorder %s32, 3
      %p64 = por %p62, %p63
      %p65 = scmp.ne.s32.totalorder %s54, %s55
      %p66 = scmp.eq.s32.totalorder %s32, 0
      %p67 = por %p65, %p66
      %p68 = scmp.ne.s32.totalorder %s54, %s55
      %p69 = scmp.eq.s32.totalorder %s33, 3
      %p70 = por %p68, %p69
      %p72 = scmp.ne.s32.totalorder %s55, %s71
      %p73 = scmp.eq.s32.totalorder %s33, 0
      %p74 = por %p72, %p73
      %s75 = ssub.s32 %s35, %s42
      %p76 = scmp.eq.s32.totalorder %s75, 0
      %s78 = sadd.s32 %s77, 1
      %s79 = scalar_select %p76, %s77, %s78
      %p82 = pneg %p76
      %p83 = scmp.eq.s32.totalorder %s27, 3
      %p84 = por %p82, %p83
      %p85 = scmp.ne.s32.totalorder %s77, %s80
      %p86 = scmp.eq.s32.totalorder %s27, 0
      %p87 = por %p85, %p86
      %p88 = scmp.ne.s32.totalorder %s77, %s80
      %p89 = scmp.eq.s32.totalorder %s32, 3
      %p90 = por %p88, %p89
      %p91 = scmp.ne.s32.totalorder %s80, %s81
      %p92 = scmp.eq.s32.totalorder %s32, 0
      %p93 = por %p91, %p92
      %p94 = scmp.ne.s32.totalorder %s80, %s81
      %p95 = scmp.eq.s32.totalorder %s33, 3
      %p96 = por %p94, %p95
      %p98 = scmp.ne.s32.totalorder %s81, %s97
      %p99 = scmp.eq.s32.totalorder %s33, 0
      %p100 = por %p98, %p99
      %s102 = sadd.s32 %s101, 1
      %p105 = scmp.eq.s32.totalorder %s27, 3
      %p106 = scmp.ne.s32.totalorder %s101, %s103
      %p107 = scmp.eq.s32.totalorder %s27, 0
      %p108 = por %p106, %p107
      %p109 = scmp.ne.s32.totalorder %s101, %s103
      %p110 = scmp.eq.s32.totalorder %s32, 3
      %p111 = por %p109, %p110
      %p112 = scmp.ne.s32.totalorder %s103, %s104
      %p113 = scmp.eq.s32.totalorder %s32, 0
      %p114 = por %p112, %p113
      %p115 = scmp.ne.s32.totalorder %s103, %s104
      %p116 = scmp.eq.s32.totalorder %s33, 3
      %p117 = por %p115, %p116
      %p119 = scmp.ne.s32.totalorder %s104, %s118
      %p120 = scmp.eq.s32.totalorder %s33, 0
      %p121 = por %p119, %p120
      %s123 = sadd.s32 %s122, 1
      %p126 = scmp.eq.s32.totalorder %s27, 3
      %p127 = scmp.ne.s32.totalorder %s122, %s124
      %p128 = scmp.eq.s32.totalorder %s27, 0
      %p129 = por %p127, %p128
      %p130 = scmp.ne.s32.totalorder %s122, %s124
      %p131 = scmp.eq.s32.totalorder %s32, 3
      %p132 = por %p130, %p131
      %p133 = scmp.ne.s32.totalorder %s124, %s125
      %p134 = scmp.eq.s32.totalorder %s32, 0
      %p135 = por %p133, %p134
      %p136 = scmp.ne.s32.totalorder %s124, %s125
      %p137 = scmp.eq.s32.totalorder %s33, 3
      %p138 = por %p136, %p137
      %p140 = scmp.ne.s32.totalorder %s125, %s139
      %p141 = scmp.eq.s32.totalorder %s33, 0
      %p142 = por %p140, %p141
      %s144 = sadd.s32 %s143, 1
      %p147 = scmp.eq.s32.totalorder %s27, 3
      %p148 = scmp.ne.s32.totalorder %s143, %s145
      %p149 = scmp.eq.s32.totalorder %s27, 0
      %p150 = por %p148, %p149
      %p151 = scmp.ne.s32.totalorder %s143, %s145
      %p152 = scmp.eq.s32.totalorder %s32, 3
      %p153 = por %p151, %p152
      %p154 = scmp.ne.s32.totalorder %s145, %s146
      %p155 = scmp.eq.s32.totalorder %s32, 0
      %p156 = por %p154, %p155
      %p157 = scmp.ne.s32.totalorder %s145, %s146
      %p158 = scmp.eq.s32.totalorder %s33, 3
      %p159 = por %p157, %p158
      %p161 = scmp.ne.s32.totalorder %s146, %s160
      %p162 = scmp.eq.s32.totalorder %s33, 0
      %p163 = por %p161, %p162
      %s165 = sadd.s32 %s164, 1
      %p168 = scmp.eq.s32.totalorder %s27, 3
      %p169 = scmp.ne.s32.totalorder %s164, %s166
      %p170 = scmp.eq.s32.totalorder %s27, 0
      %p171 = por %p169, %p170
      %p172 = scmp.ne.s32.totalorder %s164, %s166
      %p173 = scmp.eq.s32.totalorder %s32, 3
      %p174 = por %p172, %p173
      %p175 = scmp.ne.s32.totalorder %s166, %s167
      %p176 = scmp.eq.s32.totalorder %s32, 0
      %p177 = por %p175, %p176
      %p178 = scmp.ne.s32.totalorder %s166, %s167
      %p179 = scmp.eq.s32.totalorder %s33, 3
      %p180 = por %p178, %p179
      %p182 = scmp.ne.s32.totalorder %s167, %s181
      %p183 = scmp.eq.s32.totalorder %s33, 0
      %p184 = por %p182, %p183
      %s186 = sadd.s32 %s185, 1
      %p189 = scmp.eq.s32.totalorder %s27, 3
      %p190 = scmp.ne.s32.totalorder %s185, %s187
      %p191 = scmp.eq.s32.totalorder %s27, 0
      %p192 = por %p190, %p191
      %p193 = scmp.ne.s32.totalorder %s185, %s187
      %p194 = scmp.eq.s32.totalorder %s32, 3
      %p195 = por %p193, %p194
      %p196 = scmp.ne.s32.totalorder %s187, %s188
      %p197 = scmp.eq.s32.totalorder %s32, 0
      %p198 = por %p196, %p197
      %p199 = scmp.ne.s32.totalorder %s187, %s188
      %p200 = scmp.eq.s32.totalorder %s33, 3
      %p201 = por %p199, %p200
      %p203 = scmp.ne.s32.totalorder %s188, %s202
      %p204 = scmp.eq.s32.totalorder %s33, 0
      %p205 = por %p203, %p204
      %s207 = sadd.s32 %s206, 1
      %p210 = scmp.eq.s32.totalorder %s27, 3
      %p211 = scmp.ne.s32.totalorder %s206, %s208
      %p212 = scmp.eq.s32.totalorder %s27, 0
      %p213 = por %p211, %p212
      %p214 = scmp.ne.s32.totalorder %s206, %s208
      %p215 = scmp.eq.s32.totalorder %s32, 3
      %p216 = por %p214, %p215
      %p217 = scmp.ne.s32.totalorder %s208, %s209
      %p218 = scmp.eq.s32.totalorder %s32, 0
      %p219 = por %p217, %p218
      %p220 = scmp.ne.s32.totalorder %s208, %s209
      %p221 = scmp.eq.s32.totalorder %s33, 3
      %p222 = por %p220, %p221
      %p224 = scmp.ne.s32.totalorder %s209, %s223
      %p225 = scmp.eq.s32.totalorder %s33, 0
      %p226 = por %p224, %p225
      %s228 = sadd.s32 %s227, 1
      %p231 = scmp.eq.s32.totalorder %s27, 3
      %p232 = scmp.ne.s32.totalorder %s227, %s229
      %p233 = scmp.eq.s32.totalorder %s27, 0
      %p234 = por %p232, %p233
      %p235 = scmp.ne.s32.totalorder %s227, %s229
      %p236 = scmp.eq.s32.totalorder %s32, 3
      %p237 = por %p235, %p236
      %p238 = scmp.ne.s32.totalorder %s229, %s230
      %p239 = scmp.eq.s32.totalorder %s32, 0
      %p240 = por %p238, %p239
      %p241 = scmp.ne.s32.totalorder %s229, %s230
      %p242 = scmp.eq.s32.totalorder %s33, 3
      %p243 = por %p241, %p242
      %p245 = scmp.ne.s32.totalorder %s230, %s244
      %p246 = scmp.eq.s32.totalorder %s33, 0
      %p247 = por %p245, %p246
      %s249 = sadd.s32 %s248, 1
      %p252 = scmp.eq.s32.totalorder %s27, 3
      %p253 = scmp.ne.s32.totalorder %s248, %s250
      %p254 = scmp.eq.s32.totalorder %s27, 0
      %p255 = por %p253, %p254
      %p256 = scmp.ne.s32.totalorder %s248, %s250
      %p257 = scmp.eq.s32.totalorder %s32, 3
      %p258 = por %p256, %p257
      %p259 = scmp.ne.s32.totalorder %s250, %s251
      %p260 = scmp.eq.s32.totalorder %s32, 0
      %p261 = por %p259, %p260
      %p262 = scmp.ne.s32.totalorder %s250, %s251
      %p263 = scmp.eq.s32.totalorder %s33, 3
      %p264 = por %p262, %p263
      %p266 = scmp.ne.s32.totalorder %s251, %s265
      %p267 = scmp.eq.s32.totalorder %s33, 0
      %p268 = por %p266, %p267
      %s270 = sadd.s32 %s269, 1
      %p273 = scmp.eq.s32.totalorder %s27, 3
      %p274 = scmp.ne.s32.totalorder %s269, %s271
      %p275 = scmp.eq.s32.totalorder %s27, 0
      %p276 = por %p274, %p275
      %p277 = scmp.ne.s32.totalorder %s269, %s271
      %p278 = scmp.eq.s32.totalorder %s32, 3
      %p279 = por %p277, %p278
      %p280 = scmp.ne.s32.totalorder %s271, %s272
      %p281 = scmp.eq.s32.totalorder %s32, 0
      %p282 = por %p280, %p281
      %p283 = scmp.ne.s32.totalorder %s271, %s272
      %p284 = scmp.eq.s32.totalorder %s33, 3
      %p285 = por %p283, %p284
      %p287 = scmp.ne.s32.totalorder %s272, %s286
      %p288 = scmp.eq.s32.totalorder %s33, 0
      %p289 = por %p287, %p288
      %s290 = ssub.s32 %s34, %s46
      %p291 = scmp.eq.s32.totalorder %s290, 0
      %s293 = sadd.s32 %s292, 1
      %s294 = scalar_select %p291, %s292, %s293
      %p297 = pneg %p291
      %p298 = scmp.eq.s32.totalorder %s27, 3
      %p299 = por %p297, %p298
      %p300 = scmp.ne.s32.totalorder %s292, %s295
      %p301 = scmp.eq.s32.totalorder %s27, 0
      %p302 = por %p300, %p301
      %p303 = scmp.ne.s32.totalorder %s292, %s295
      %p304 = scmp.eq.s32.totalorder %s32, 3
      %p305 = por %p303, %p304
      %p306 = scmp.ne.s32.totalorder %s295, %s296
      %p307 = scmp.eq.s32.totalorder %s32, 0
      %p308 = por %p306, %p307
      %p309 = scmp.ne.s32.totalorder %s295, %s296
      %p310 = scmp.eq.s32.totalorder %s33, 3
      %p311 = por %p309, %p310
      %p313 = scmp.ne.s32.totalorder %s296, %s312
      %p314 = scmp.eq.s32.totalorder %s33, 0
      %p315 = por %p313, %p314
      %p316 = scmp.le.s32.totalorder 1, %s27
      %p317 = scmp.lt.s32.totalorder %s27, 5
      %p318 = pnand %p316, %p317
      %p319 = pneg %p318
      // Predicated region
      $region9: #{tpu_custom_call.1} parent=5 // pred_check
        _
      $region10: #{tpu_custom_call.1} parent=5 // pred_check_branch
        %321 = sbr.rel (%p318) target = $region12
      $region11: #{tpu_custom_call.1} parent=5 // pred_region
        %s322 = ssub.s32 %s27, 1
        // Predicated region
        $region13: #{tpu_custom_call.1} parent=11 // pred_check
          %p323 = pneg %p114
        $region14: #{tpu_custom_call.1} parent=11 // pred_check_branch
          %325 = sbr.rel (%p323) target = $region16
        $region15: #{tpu_custom_call.1} parent=11 // pred_region
          _
        $region16: #{tpu_custom_call.1} parent=11 // pred_fallthru
          _
        // Predicated region
        $region17: #{tpu_custom_call.1} parent=11 // pred_check
          %p326 = pneg %p135
        $region18: #{tpu_custom_call.1} parent=11 // pred_check_branch
          %328 = sbr.rel (%p326) target = $region20
        $region19: #{tpu_custom_call.1} parent=11 // pred_region
          _
        $region20: #{tpu_custom_call.1} parent=11 // pred_fallthru
          _
        // Predicated region
        $region21: #{tpu_custom_call.1} parent=11 // pred_check
          %p329 = pneg %p156
        $region22: #{tpu_custom_call.1} parent=11 // pred_check_branch
          %331 = sbr.rel (%p329) target = $region24
        $region23: #{tpu_custom_call.1} parent=11 // pred_region
          _
        $region24: #{tpu_custom_call.1} parent=11 // pred_fallthru
          _
        // Predicated region
        $region25: #{tpu_custom_call.1} parent=11 // pred_check
          %p332 = pneg %p177
        $region26: #{tpu_custom_call.1} parent=11 // pred_check_branch
          %334 = sbr.rel (%p332) target = $region28
        $region27: #{tpu_custom_call.1} parent=11 // pred_region
          %s336 = ssub.s32 1024, 1024
          %337 = vsyncadd [#allocation7], %s336
          %s338 = sshll.u32 [#allocation8], 4
          %s339 = int_to_ptr.vmem [resolvable:$true] %s338
          %344 = dma.hbm_to_vmem [thread:$0]  %s5, 1024, %s339, [#allocation7], 64, 64, 4
        $region28: #{tpu_custom_call.1} parent=11 // pred_fallthru
          _
        // Predicated region
        $region29: #{tpu_custom_call.1} parent=11 // pred_check
          %p345 = pneg %p198
        $region30: #{tpu_custom_call.1} parent=11 // pred_check_branch
          %347 = sbr.rel (%p345) target = $region32
        $region31: #{tpu_custom_call.1} parent=11 // pred_region
          _
        $region32: #{tpu_custom_call.1} parent=11 // pred_fallthru
          _
        // Predicated region
        $region33: #{tpu_custom_call.1} parent=11 // pred_check
          %p348 = pneg %p219
        $region34: #{tpu_custom_call.1} parent=11 // pred_check_branch
          %350 = sbr.rel (%p348) target = $region36
        $region35: #{tpu_custom_call.1} parent=11 // pred_region
          %s352 = ssub.s32 1024, 1024
          %353 = vsyncadd [#allocation10], %s352
          %s354 = sshll.u32 [#allocation9], 4
          %s355 = int_to_ptr.vmem [resolvable:$true] %s354
          %360 = dma.hbm_to_vmem [thread:$0]  %s7, 1024, %s355, [#allocation10], 64, 64, 4
        $region36: #{tpu_custom_call.1} parent=11 // pred_fallthru
          _
        // Predicated region
        $region37: #{tpu_custom_call.1} parent=11 // pred_check
          %p361 = pneg %p240
        $region38: #{tpu_custom_call.1} parent=11 // pred_check_branch
          %363 = sbr.rel (%p361) target = $region40
        $region39: #{tpu_custom_call.1} parent=11 // pred_region
          _
        $region40: #{tpu_custom_call.1} parent=11 // pred_fallthru
          _
        // Predicated region
        $region41: #{tpu_custom_call.1} parent=11 // pred_check
          %p364 = pneg %p261
        $region42: #{tpu_custom_call.1} parent=11 // pred_check_branch
          %366 = sbr.rel (%p364) target = $region44
        $region43: #{tpu_custom_call.1} parent=11 // pred_region
          %s368 = ssub.s32 1024, 1024
          %369 = vsyncadd [#allocation10], %s368
          %s370 = sshll.u32 [#allocation11], 4
          %s371 = int_to_ptr.vmem [resolvable:$true] %s370
          %376 = dma.hbm_to_vmem [thread:$0]  %s9, 1024, %s371, [#allocation10], 64, 64, 4
        $region44: #{tpu_custom_call.1} parent=11 // pred_fallthru
          _
        // Predicated region
        $region45: #{tpu_custom_call.1} parent=11 // pred_check
          %p377 = pneg %p282
        $region46: #{tpu_custom_call.1} parent=11 // pred_check_branch
          %379 = sbr.rel (%p377) target = $region48
        $region47: #{tpu_custom_call.1} parent=11 // pred_region
          _
        $region48: #{tpu_custom_call.1} parent=11 // pred_fallthru
          _
      $region12: #{tpu_custom_call.1} parent=5 // pred_fallthru
        _
      %p380 = scmp.lt.s32.totalorder %s27, 4
      // Predicated region
      $region49: #{tpu_custom_call.1} parent=5 // pred_check
        %p381 = pneg %p380
      $region50: #{tpu_custom_call.1} parent=5 // pred_check_branch
        %383 = sbr.rel (%p381) target = $region52
      $region51: #{tpu_custom_call.1} parent=5 // pred_region
        // Predicated region
        $region53: #{tpu_custom_call.1} parent=51 // pred_check
          %p384 = pneg %p61
        $region54: #{tpu_custom_call.1} parent=51 // pred_check_branch
          %386 = sbr.rel (%p384) target = $region56
        $region55: #{tpu_custom_call.1} parent=51 // pred_region
          %s387 = sand.u32 %s51, 1
          %s388 = scalar_lea.sflag [#allocation4], %s387
          %s389 = sand.u32 %s51, 1
          %s390 = smul.addr %s389, 32
          %s391 = scalar_lea.vmem [#allocation3], %s390
          %s392 = smul.u32 8, %s34
          %s394 = ssub.s32 512, 512
          %395 = vsyncadd %s388, %s394
          %s396 = smul.addr %s392, 2
          %s397 = sadd.s32 %s35, %s396
          %s398 = smul.addr %s397, 64
          %s399 = scalar_lea.hbm %s0, %s398
          %s400 = sshll.u32 %s391, 4
          %s401 = int_to_ptr.vmem [resolvable:$true] %s400
          %406 = dma.hbm_to_vmem [thread:$0]  %s399, 512, %s401, %s388, 128, 64, 4
        $region56: #{tpu_custom_call.1} parent=51 // pred_fallthru
          _
        // Predicated region
        $region57: #{tpu_custom_call.1} parent=51 // pred_check
          %p407 = pneg %p87
        $region58: #{tpu_custom_call.1} parent=51 // pred_check_branch
          %409 = sbr.rel (%p407) target = $region60
        $region59: #{tpu_custom_call.1} parent=51 // pred_region
          %s410 = sand.u32 %s27, 1
          %s411 = scalar_lea.sflag [#allocation7], %s410
          %s412 = sand.u32 %s77, 1
          %s413 = smul.addr %s412, 64
          %s414 = scalar_lea.vmem [#allocation6], %s413
          %s415 = smul.u32 16, %s35
          %s417 = ssub.s32 1024, 1024
          %418 = vsyncadd %s411, %s417
          %s419 = smul.addr %s415, 64
          %s420 = scalar_lea.hbm %s1, %s419
          %s421 = sshll.u32 %s414, 4
          %s422 = int_to_ptr.vmem [resolvable:$true] %s421
          %427 = dma.hbm_to_vmem [thread:$0]  %s420, 1024, %s422, %s411, 64, 64, 4
        $region60: #{tpu_custom_call.1} parent=51 // pred_fallthru
          _
      $region52: #{tpu_custom_call.1} parent=5 // pred_fallthru
        _
      %p428 = scmp.le.s32.totalorder 1, %s27
      %p429 = scmp.lt.s32.totalorder %s27, 5
      %p430 = pnand %p428, %p429
      %p431 = pneg %p430
      // Predicated region
      $region61: #{tpu_custom_call.1} parent=5 // pred_check
        _
      $region62: #{tpu_custom_call.1} parent=5 // pred_check_branch
        %433 = sbr.rel (%p430) target = $region64
      $region63: #{tpu_custom_call.1} parent=5 // pred_region
        %s434 = ssub.s32 %s27, 1
        %s435 = sand.u32 %s54, 1
        %s436 = scalar_lea.sflag [#allocation4], %s435
        %s437 = sand.u32 %s54, 1
        %s438 = smul.addr %s437, 32
        %s439 = scalar_lea.vmem [#allocation3], %s438
        // Predicated region
        $region65: #{tpu_custom_call.1} parent=63 // pred_check
          %p440 = pneg %p67
        $region66: #{tpu_custom_call.1} parent=63 // pred_check_branch
          %442 = sbr.rel (%p440) target = $region68
        $region67: #{tpu_custom_call.1} parent=63 // pred_region
          %443 = dma.done %s436, 512
        $region68: #{tpu_custom_call.1} parent=63 // pred_fallthru
          _
        %s444 = sand.u32 %s32, 1
        %s445 = scalar_lea.sflag [#allocation7], %s444
        %s446 = sand.u32 %s80, 1
        %s447 = smul.addr %s446, 64
        %s448 = scalar_lea.vmem [#allocation6], %s447
        // Predicated region
        $region69: #{tpu_custom_call.1} parent=63 // pred_check
          %p449 = pneg %p93
        $region70: #{tpu_custom_call.1} parent=63 // pred_check_branch
          %451 = sbr.rel (%p449) target = $region72
        $region71: #{tpu_custom_call.1} parent=63 // pred_region
          %452 = dma.done %s445, 1024
        $region72: #{tpu_custom_call.1} parent=63 // pred_fallthru
          _
        // Predicated region
        $region73: #{tpu_custom_call.1} parent=63 // pred_check
          %p453 = pneg %p177
        $region74: #{tpu_custom_call.1} parent=63 // pred_check_branch
          %455 = sbr.rel (%p453) target = $region76
        $region75: #{tpu_custom_call.1} parent=63 // pred_region
          %456 = dma.done [#allocation7], 1024
        $region76: #{tpu_custom_call.1} parent=63 // pred_fallthru
          _
        // Predicated region
        $region77: #{tpu_custom_call.1} parent=63 // pred_check
          %p457 = pneg %p219
        $region78: #{tpu_custom_call.1} parent=63 // pred_check_branch
          %459 = sbr.rel (%p457) target = $region80
        $region79: #{tpu_custom_call.1} parent=63 // pred_region
          %460 = dma.done [#allocation10], 1024
        $region80: #{tpu_custom_call.1} parent=63 // pred_fallthru
          _
        // Predicated region
        $region81: #{tpu_custom_call.1} parent=63 // pred_check
          %p461 = pneg %p261
        $region82: #{tpu_custom_call.1} parent=63 // pred_check_branch
          %463 = sbr.rel (%p461) target = $region84
        $region83: #{tpu_custom_call.1} parent=63 // pred_region
          %464 = dma.done [#allocation10], 1024
        $region84: #{tpu_custom_call.1} parent=63 // pred_fallthru
          _
        %s465 = sand.u32 %s54, 1
        %s466 = scalar_lea.sflag [#allocation4], %s465
        %s467 = sand.u32 %s54, 1
        %s468 = smul.addr %s467, 32
        %s469 = scalar_lea.vmem [#allocation3], %s468
        %p470 = pneg %p67
        %p471 = pneg %p64
        %s472 = sand.u32 %s32, 1
        %s473 = scalar_lea.sflag [#allocation7], %s472
        %s474 = sand.u32 %s80, 1
        %s475 = smul.addr %s474, 64
        %s476 = scalar_lea.vmem [#allocation6], %s475
        %p477 = pneg %p93
        %p478 = pneg %p90
        %p479 = pneg %p114
        %p480 = pneg %p111
        %p481 = pneg %p135
        %p482 = pneg %p132
        %p483 = pneg %p156
        %p484 = pneg %p153
        %p485 = pneg %p177
        %p486 = pneg %p174
        %p487 = pneg %p198
        %p488 = pneg %p195
        %p489 = pneg %p219
        %p490 = pneg %p216
        %p491 = pneg %p240
        %p492 = pneg %p237
        %p493 = pneg %p261
        %p494 = pneg %p258
        %p495 = pneg %p282
        %p496 = pneg %p279
        %p497 = pneg %p308
        %p498 = pneg %p305
        %s499 = sand.u32 %s295, 1
        %s500 = scalar_lea.sflag [#allocation5], %s499
        %s501 = sand.u32 %s295, 1
        %s502 = smul.addr %s501, 64
        %s503 = scalar_lea.vmem [#allocation12], %s502
        %s504 = smul.u32 8, %s36
        %s505 = smul.u32 16, %s37
        %s506 = smul.u32 8, %s36
        %p508 = scmp.eq.s32.totalorder %s37, 0
        // Predicated region
        $region85: #{tpu_custom_call.1} parent=63 // pred_check
          %p509 = pneg %p508
        $region86: #{tpu_custom_call.1} parent=63 // pred_check_branch
          %511 = sbr.rel (%p509) target = $region88
        $region87: #{tpu_custom_call.1} parent=63 // pred_region
          %v512 = vld [vmem:[%s2] sm:$0x1]
          %v514 = vlaneseq
          %v515 = vshrl.u32 %v514, 7
          %v516 = vsub.s32 0, %v515
          %v517 = vrot.slane %v512, %v516
          %519 = vst [vmem:[#allocation2] sm:$0xff] %v517
          %520 = vst [vmem:[#allocation2 + $0x8] sm:$0xff] %v517
          %521 = vst [vmem:[#allocation2 + $0x10] sm:$0xff] %v517
          %522 = vst [vmem:[#allocation2 + $0x18] sm:$0xff] %v517
          %523 = vst [vmem:[#allocation2 + $0x20] sm:$0xff] %v517
          %524 = vst [vmem:[#allocation2 + $0x28] sm:$0xff] %v517
          %525 = vst [vmem:[#allocation2 + $0x30] sm:$0xff] %v517
          %526 = vst [vmem:[#allocation2 + $0x38] sm:$0xff] %v517
        $region88: #{tpu_custom_call.1} parent=63 // pred_fallthru
          _
        %v527 = vld [vmem:[#allocation2] sm:$0xff]
        %v528 = vld [vmem:[#allocation2 + $0x8] sm:$0xff]
        %v529 = vld [vmem:[#allocation2 + $0x10] sm:$0xff]
        %v530 = vld [vmem:[#allocation2 + $0x18] sm:$0xff]
        %v531 = vld [vmem:[#allocation2 + $0x20] sm:$0xff]
        %v532 = vld [vmem:[#allocation2 + $0x28] sm:$0xff]
        %v533 = vld [vmem:[#allocation2 + $0x30] sm:$0xff]
        %v534 = vld [vmem:[#allocation2 + $0x38] sm:$0xff]
        %v535 = vld [vmem:[%s439] sm:$0xf]
        %v536 = vld [vmem:[%s439 + $0x4] sm:$0xf]
        %v537 = vld [vmem:[%s439 + $0x8] sm:$0xf]
        %v538 = vld [vmem:[%s439 + $0xc] sm:$0xf]
        %v539 = vld [vmem:[%s439 + $0x10] sm:$0xf]
        %v540 = vld [vmem:[%s439 + $0x14] sm:$0xf]
        %v541 = vld [vmem:[%s439 + $0x18] sm:$0xf]
        %v542 = vld [vmem:[%s439 + $0x1c] sm:$0xf]
        %v543 = vld [vmem:[%s448] sm:$0xf]
        %v544 = vld [vmem:[%s448 + $0x4] sm:$0xf]
        %v545 = vld [vmem:[%s448 + $0x8] sm:$0xf]
        %v546 = vld [vmem:[%s448 + $0xc] sm:$0xf]
        %v547 = vld [vmem:[%s448 + $0x10] sm:$0xf]
        %v548 = vld [vmem:[%s448 + $0x14] sm:$0xf]
        %v549 = vld [vmem:[%s448 + $0x18] sm:$0xf]
        %v550 = vld [vmem:[%s448 + $0x1c] sm:$0xf]
        %v551 = vld [vmem:[%s448 + $0x20] sm:$0xf]
        %v552 = vld [vmem:[%s448 + $0x24] sm:$0xf]
        %v553 = vld [vmem:[%s448 + $0x28] sm:$0xf]
        %v554 = vld [vmem:[%s448 + $0x2c] sm:$0xf]
        %v555 = vld [vmem:[%s448 + $0x30] sm:$0xf]
        %v556 = vld [vmem:[%s448 + $0x34] sm:$0xf]
        %v557 = vld [vmem:[%s448 + $0x38] sm:$0xf]
        %v558 = vld [vmem:[%s448 + $0x3c] sm:$0xf]
        %v567 = vunpack.c.l.b16 %v535
        %v568 = vunpack.c.l.b16 %v536
        %v569 = vunpack.c.l.b16 %v537
        %v570 = vunpack.c.l.b16 %v538
        %v571 = vunpack.c.l.b16 %v539
        %v572 = vunpack.c.l.b16 %v540
        %v573 = vunpack.c.l.b16 %v541
        %v574 = vunpack.c.l.b16 %v542
        %v575 = vpack.c.b16 %v568, %v567
        %v576 = vpack.c.b16 %v570, %v569
        %v577 = vpack.c.b16 %v572, %v571
        %v578 = vpack.c.b16 %v574, %v573
        %v599 = vunpack.c.l.b16 %v543
        %v600 = vunpack.c.l.b16 %v544
        %v601 = vunpack.c.l.b16 %v545
        %v602 = vunpack.c.l.b16 %v546
        %v603 = vunpack.c.l.b16 %v547
        %v604 = vunpack.c.l.b16 %v548
        %v605 = vunpack.c.l.b16 %v549
        %v606 = vunpack.c.l.b16 %v550
        %v607 = vunpack.c.l.b16 %v551
        %v608 = vunpack.c.l.b16 %v552
        %v609 = vunpack.c.l.b16 %v553
        %v610 = vunpack.c.l.b16 %v554
        %v611 = vunpack.c.l.b16 %v555
        %v612 = vunpack.c.l.b16 %v556
        %v613 = vunpack.c.l.b16 %v557
        %v614 = vunpack.c.l.b16 %v558
        %v615 = vpack.c.b16 %v600, %v599
        %v616 = vpack.c.b16 %v602, %v601
        %v617 = vpack.c.b16 %v604, %v603
        %v618 = vpack.c.b16 %v606, %v605
        %v619 = vpack.c.b16 %v608, %v607
        %v620 = vpack.c.b16 %v610, %v609
        %v621 = vpack.c.b16 %v612, %v611
        %v622 = vpack.c.b16 %v614, %v613
        %631 = vmatprep.subr.bf16.mxu0 0
        %632 = vmatpush1.bf16.msra.mxu0 %v615
        %633 = vmatprep.subr.bf16.mxu0 0
        %634 = vmatpush1.bf16.msra.mxu0 %v616
        %635 = vmatprep.subr.bf16.mxu0 0
        %636 = vmatpush1.bf16.msra.mxu0 %v617
        %637 = vmatprep.subr.bf16.mxu0 0
        %638 = vmatpush1.bf16.msra.mxu0 %v618
        %639 = vmatprep.subr.bf16.mxu0 0
        %640 = vmatpush1.bf16.msra.mxu0 %v619
        %641 = vmatprep.subr.bf16.mxu0 0
        %642 = vmatpush1.bf16.msra.mxu0 %v620
        %643 = vmatprep.subr.bf16.mxu0 0
        %644 = vmatpush1.bf16.msra.mxu0 %v621
        %645 = vmatprep.subr.bf16.mxu0 0
        %646 = vmatpush1.bf16.msra.mxu0 %v622
        %647 = vmatprep.subr.bf16.mxu0 0
        %648 = vmatpush1.bf16.msra.mxu0 0
        %649 = vmatprep.subr.bf16.mxu0 0
        %650 = vmatpush1.bf16.msra.mxu0 0
        %651 = vmatprep.subr.bf16.mxu0 0
        %652 = vmatpush1.bf16.msra.mxu0 0
        %653 = vmatprep.subr.bf16.mxu0 0
        %654 = vmatpush1.bf16.msra.mxu0 0
        %655 = vmatprep.subr.bf16.mxu0 0
        %656 = vmatpush1.bf16.msra.mxu0 0
        %657 = vmatprep.subr.bf16.mxu0 0
        %658 = vmatpush1.bf16.msra.mxu0 0
        %659 = vmatprep.subr.bf16.mxu0 0
        %660 = vmatpush1.bf16.msra.mxu0 0
        %661 = vmatprep.subr.bf16.mxu0 0
        %662 = vmatpush1.bf16.msra.mxu0 0
        %663 = vmatprep.mubr.bf16.mxu0 0
        %664 = vmatmul.mubr.bf16.gmra.mrb[0].mxu0 %v575
        %v665 = vpop.f32.mrb[0].mxu0
        %v666 = vadd.f32 0.0, %v665
        %v667 = vpop.f32.mrb[0].mxu0
        %v668 = vpop.f32.mrb[0].mxu0
        %v669 = vadd.f32 0.0, %v668
        %v670 = vpop.f32.mrb[0].mxu0
        %671 = vmatprep.mubr.bf16.mxu0 0
        %672 = vmatmul.mubr.bf16.gmra.mrb[0].mxu0 %v576
        %v673 = vpop.f32.mrb[0].mxu0
        %v674 = vadd.f32 0.0, %v673
        %v675 = vpop.f32.mrb[0].mxu0
        %v676 = vpop.f32.mrb[0].mxu0
        %v677 = vadd.f32 0.0, %v676
        %v678 = vpop.f32.mrb[0].mxu0
        %679 = vmatprep.mubr.bf16.mxu0 0
        %680 = vmatmul.mubr.bf16.gmra.mrb[0].mxu0 %v577
        %v681 = vpop.f32.mrb[0].mxu0
        %v682 = vadd.f32 0.0, %v681
        %v683 = vpop.f32.mrb[0].mxu0
        %v684 = vpop.f32.mrb[0].mxu0
        %v685 = vadd.f32 0.0, %v684
        %v686 = vpop.f32.mrb[0].mxu0
        %687 = vmatprep.mubr.bf16.mxu0 0
        %688 = vmatmul.mubr.bf16.gmra.mrb[0].mxu0 %v578
        %v689 = vpop.f32.mrb[0].mxu0
        %v690 = vadd.f32 0.0, %v689
        %v691 = vpop.f32.mrb[0].mxu0
        %v692 = vpop.f32.mrb[0].mxu0
        %v693 = vadd.f32 0.0, %v692
        %v694 = vpop.f32.mrb[0].mxu0
        %695 = vdwg.mxu0
        %v696 = vadd.f32 %v527, %v666
        %v697 = vadd.f32 %v528, %v669
        %v698 = vadd.f32 %v529, %v674
        %v699 = vadd.f32 %v530, %v677
        %v700 = vadd.f32 %v531, %v682
        %v701 = vadd.f32 %v532, %v685
        %v702 = vadd.f32 %v533, %v690
        %v703 = vadd.f32 %v534, %v693
        %704 = vst [vmem:[#allocation2] sm:$0xff] %v696
        %705 = vst [vmem:[#allocation2 + $0x8] sm:$0xff] %v697
        %706 = vst [vmem:[#allocation2 + $0x10] sm:$0xff] %v698
        %707 = vst [vmem:[#allocation2 + $0x18] sm:$0xff] %v699
        %708 = vst [vmem:[#allocation2 + $0x20] sm:$0xff] %v700
        %709 = vst [vmem:[#allocation2 + $0x28] sm:$0xff] %v701
        %710 = vst [vmem:[#allocation2 + $0x30] sm:$0xff] %v702
        %711 = vst [vmem:[#allocation2 + $0x38] sm:$0xff] %v703
        %p712 = scmp.eq.s32.totalorder %s37, 1
        // Predicated region
        $region89: #{tpu_custom_call.1} parent=63 // pred_check
          %p713 = pneg %p712
        $region90: #{tpu_custom_call.1} parent=63 // pred_check_branch
          %715 = sbr.rel (%p713) target = $region92
        $region91: #{tpu_custom_call.1} parent=63 // pred_region
          %v716 = vld [vmem:[#allocation2] sm:$0xff]
          %v717 = vld [vmem:[#allocation2 + $0x8] sm:$0xff]
          %v718 = vld [vmem:[#allocation2 + $0x10] sm:$0xff]
          %v719 = vld [vmem:[#allocation2 + $0x18] sm:$0xff]
          %v720 = vld [vmem:[#allocation2 + $0x20] sm:$0xff]
          %v721 = vld [vmem:[#allocation2 + $0x28] sm:$0xff]
          %v722 = vld [vmem:[#allocation2 + $0x30] sm:$0xff]
          %v723 = vld [vmem:[#allocation2 + $0x38] sm:$0xff]
          %724 = vadd.xlane.f32.xlu0 %v716
          %v725 = vpop.xlane.xlu0 %724
          %726 = vadd.xlane.f32.xlu0 %v717
          %v727 = vpop.xlane.xlu0 %726
          %728 = vadd.xlane.f32.xlu0 %v718
          %v729 = vpop.xlane.xlu0 %728
          %730 = vadd.xlane.f32.xlu0 %v719
          %v731 = vpop.xlane.xlu0 %730
          %732 = vadd.xlane.f32.xlu0 %v720
          %v733 = vpop.xlane.xlu0 %732
          %734 = vadd.xlane.f32.xlu0 %v721
          %v735 = vpop.xlane.xlu0 %734
          %736 = vadd.xlane.f32.xlu0 %v722
          %v737 = vpop.xlane.xlu0 %736
          %738 = vadd.xlane.f32.xlu0 %v723
          %v739 = vpop.xlane.xlu0 %738
          %v740 = vmul.f32 %v716, %v716
          %v741 = vmul.f32 %v717, %v717
          %v742 = vmul.f32 %v718, %v718
          %v743 = vmul.f32 %v719, %v719
          %v744 = vmul.f32 %v720, %v720
          %v745 = vmul.f32 %v721, %v721
          %v746 = vmul.f32 %v722, %v722
          %v747 = vmul.f32 %v723, %v723
          %748 = vadd.xlane.f32.xlu0 %v740
          %v749 = vpop.xlane.xlu0 %748
          %750 = vadd.xlane.f32.xlu0 %v741
          %v751 = vpop.xlane.xlu0 %750
          %752 = vadd.xlane.f32.xlu0 %v742
          %v753 = vpop.xlane.xlu0 %752
          %754 = vadd.xlane.f32.xlu0 %v743
          %v755 = vpop.xlane.xlu0 %754
          %756 = vadd.xlane.f32.xlu0 %v744
          %v757 = vpop.xlane.xlu0 %756
          %758 = vadd.xlane.f32.xlu0 %v745
          %v759 = vpop.xlane.xlu0 %758
          %760 = vadd.xlane.f32.xlu0 %v746
          %v761 = vpop.xlane.xlu0 %760
          %762 = vadd.xlane.f32.xlu0 %v747
          %v763 = vpop.xlane.xlu0 %762
          %v764 = vmul.f32 %v725, 0.02
          %v765 = vmul.f32 %v727, 0.02
          %v766 = vmul.f32 %v729, 0.02
          %v767 = vmul.f32 %v731, 0.02
          %v768 = vmul.f32 %v733, 0.02
          %v769 = vmul.f32 %v735, 0.02
          %v770 = vmul.f32 %v737, 0.02
          %v771 = vmul.f32 %v739, 0.02
          %v772 = vmul.f32 %v749, 0.02
          %v773 = vmul.f32 %v751, 0.02
          %v774 = vmul.f32 %v753, 0.02
          %v775 = vmul.f32 %v755, 0.02
          %v776 = vmul.f32 %v757, 0.02
          %v777 = vmul.f32 %v759, 0.02
          %v778 = vmul.f32 %v761, 0.02
          %v779 = vmul.f32 %v763, 0.02
          %v780 = vmul.f32 %v764, %v764
          %v781 = vmul.f32 %v765, %v765
          %v782 = vmul.f32 %v766, %v766
          %v783 = vmul.f32 %v767, %v767
          %v784 = vmul.f32 %v768, %v768
          %v785 = vmul.f32 %v769, %v769
          %v786 = vmul.f32 %v770, %v770
          %v787 = vmul.f32 %v771, %v771
          %v788 = vsub.f32 %v772, %v780
          %v789 = vsub.f32 %v773, %v781
          %v790 = vsub.f32 %v774, %v782
          %v791 = vsub.f32 %v775, %v783
          %v792 = vsub.f32 %v776, %v784
          %v793 = vsub.f32 %v777, %v785
          %v794 = vsub.f32 %v778, %v786
          %v795 = vsub.f32 %v779, %v787
          %v796 = vsub.f32 %v716, %v764
          %v797 = vsub.f32 %v717, %v765
          %v798 = vsub.f32 %v718, %v766
          %v799 = vsub.f32 %v719, %v767
          %v800 = vsub.f32 %v720, %v768
          %v801 = vsub.f32 %v721, %v769
          %v802 = vsub.f32 %v722, %v770
          %v803 = vsub.f32 %v723, %v771
          %v804 = vadd.f32 %v788, 1e-05
          %v805 = vadd.f32 %v789, 1e-05
          %v806 = vadd.f32 %v790, 1e-05
          %v807 = vadd.f32 %v791, 1e-05
          %v808 = vadd.f32 %v792, 1e-05
          %v809 = vadd.f32 %v793, 1e-05
          %v810 = vadd.f32 %v794, 1e-05
          %v811 = vadd.f32 %v795, 1e-05
          %v812 = vrsqrt.pop %v804
          %v813 = vrsqrt.pop %v805
          %v814 = vrsqrt.pop %v806
          %v815 = vrsqrt.pop %v807
          %v816 = vrsqrt.pop %v808
          %v817 = vrsqrt.pop %v809
          %v818 = vrsqrt.pop %v810
          %v819 = vrsqrt.pop %v811
          %v820 = vmul.f32 %v796, %v812
          %v821 = vmul.f32 %v797, %v813
          %v822 = vmul.f32 %v798, %v814
          %v823 = vmul.f32 %v799, %v815
          %v824 = vmul.f32 %v800, %v816
          %v825 = vmul.f32 %v801, %v817
          %v826 = vmul.f32 %v802, %v818
          %v827 = vmul.f32 %v803, %v819
          %v828 = vld [vmem:[%s3] sm:$0x1]
          %v830 = vlaneseq
          %v831 = vshrl.u32 %v830, 7
          %v832 = vsub.s32 0, %v831
          %v833 = vrot.slane %v828, %v832
          %v835 = vmul.f32 %v820, %v833
          %v836 = vmul.f32 %v821, %v833
          %v837 = vmul.f32 %v822, %v833
          %v838 = vmul.f32 %v823, %v833
          %v839 = vmul.f32 %v824, %v833
          %v840 = vmul.f32 %v825, %v833
          %v841 = vmul.f32 %v826, %v833
          %v842 = vmul.f32 %v827, %v833
          %v843 = vld [vmem:[%s4] sm:$0x1]
          %v845 = vlaneseq
          %v846 = vshrl.u32 %v845, 7
          %v847 = vsub.s32 0, %v846
          %v848 = vrot.slane %v843, %v847
          %v850 = vadd.f32 %v835, %v848
          %v851 = vadd.f32 %v836, %v848
          %v852 = vadd.f32 %v837, %v848
          %v853 = vadd.f32 %v838, %v848
          %v854 = vadd.f32 %v839, %v848
          %v855 = vadd.f32 %v840, %v848
          %v856 = vadd.f32 %v841, %v848
          %v857 = vadd.f32 %v842, %v848
          %v858 = vtanh.pop %v850
          %v859 = vtanh.pop %v851
          %v860 = vtanh.pop %v852
          %v861 = vtanh.pop %v853
          %v862 = vtanh.pop %v854
          %v863 = vtanh.pop %v855
          %v864 = vtanh.pop %v856
          %v865 = vtanh.pop %v857
          %v866 = vpack.c.bf16 %v859, %v858
          %v867 = vpack.c.bf16 %v861, %v860
          %v868 = vpack.c.bf16 %v863, %v862
          %v869 = vpack.c.bf16 %v865, %v864
          %v870 = vld [vmem:[#allocation8] sm:$0xf]
          %v871 = vld [vmem:[#allocation8 + $0x4] sm:$0xf]
          %v872 = vld [vmem:[#allocation8 + $0x8] sm:$0xf]
          %v873 = vld [vmem:[#allocation8 + $0xc] sm:$0xf]
          %v874 = vld [vmem:[#allocation8 + $0x10] sm:$0xf]
          %v875 = vld [vmem:[#allocation8 + $0x14] sm:$0xf]
          %v876 = vld [vmem:[#allocation8 + $0x18] sm:$0xf]
          %v877 = vld [vmem:[#allocation8 + $0x1c] sm:$0xf]
          %v878 = vld [vmem:[#allocation8 + $0x20] sm:$0xf]
          %v879 = vld [vmem:[#allocation8 + $0x24] sm:$0xf]
          %v880 = vld [vmem:[#allocation8 + $0x28] sm:$0xf]
          %v881 = vld [vmem:[#allocation8 + $0x2c] sm:$0xf]
          %v882 = vld [vmem:[#allocation8 + $0x30] sm:$0xf]
          %v883 = vld [vmem:[#allocation8 + $0x34] sm:$0xf]
          %v884 = vld [vmem:[#allocation8 + $0x38] sm:$0xf]
          %v885 = vld [vmem:[#allocation8 + $0x3c] sm:$0xf]
          %v886 = vld [vmem:[%s6] sm:$0x1]
          %v888 = vlaneseq
          %v889 = vshrl.u32 %v888, 7
          %v890 = vsub.s32 0, %v889
          %v891 = vrot.slane %v886, %v890
          %v909 = vunpack.c.l.b16 %v870
          %v910 = vunpack.c.l.b16 %v871
          %v911 = vunpack.c.l.b16 %v872
          %v912 = vunpack.c.l.b16 %v873
          %v913 = vunpack.c.l.b16 %v874
          %v914 = vunpack.c.l.b16 %v875
          %v915 = vunpack.c.l.b16 %v876
          %v916 = vunpack.c.l.b16 %v877
          %v917 = vunpack.c.l.b16 %v878
          %v918 = vunpack.c.l.b16 %v879
          %v919 = vunpack.c.l.b16 %v880
          %v920 = vunpack.c.l.b16 %v881
          %v921 = vunpack.c.l.b16 %v882
          %v922 = vunpack.c.l.b16 %v883
          %v923 = vunpack.c.l.b16 %v884
          %v924 = vunpack.c.l.b16 %v885
          %v925 = vpack.c.b16 %v910, %v909
          %v926 = vpack.c.b16 %v912, %v911
          %v927 = vpack.c.b16 %v914, %v913
          %v928 = vpack.c.b16 %v916, %v915
          %v929 = vpack.c.b16 %v918, %v917
          %v930 = vpack.c.b16 %v920, %v919
          %v931 = vpack.c.b16 %v922, %v921
          %v932 = vpack.c.b16 %v924, %v923
          %941 = vmatprep.subr.bf16.mxu0 0
          %942 = vmatpush1.bf16.msra.mxu0 %v925
          %943 = vmatprep.subr.bf16.mxu0 0
          %944 = vmatpush1.bf16.msra.mxu0 %v926
          %945 = vmatprep.subr.bf16.mxu0 0
          %946 = vmatpush1.bf16.msra.mxu0 %v927
          %947 = vmatprep.subr.bf16.mxu0 0
          %948 = vmatpush1.bf16.msra.mxu0 %v928
          %949 = vmatprep.subr.bf16.mxu0 0
          %950 = vmatpush1.bf16.msra.mxu0 %v929
          %951 = vmatprep.subr.bf16.mxu0 0
          %952 = vmatpush1.bf16.msra.mxu0 %v930
          %953 = vmatprep.subr.bf16.mxu0 0
          %954 = vmatpush1.bf16.msra.mxu0 %v931
          %955 = vmatprep.subr.bf16.mxu0 0
          %956 = vmatpush1.bf16.msra.mxu0 %v932
          %957 = vmatprep.subr.bf16.mxu0 0
          %958 = vmatpush1.bf16.msra.mxu0 0
          %959 = vmatprep.subr.bf16.mxu0 0
          %960 = vmatpush1.bf16.msra.mxu0 0
          %961 = vmatprep.subr.bf16.mxu0 0
          %962 = vmatpush1.bf16.msra.mxu0 0
          %963 = vmatprep.subr.bf16.mxu0 0
          %964 = vmatpush1.bf16.msra.mxu0 0
          %965 = vmatprep.subr.bf16.mxu0 0
          %966 = vmatpush1.bf16.msra.mxu0 0
          %967 = vmatprep.subr.bf16.mxu0 0
          %968 = vmatpush1.bf16.msra.mxu0 0
          %969 = vmatprep.subr.bf16.mxu0 0
          %970 = vmatpush1.bf16.msra.mxu0 0
          %971 = vmatprep.subr.bf16.mxu0 0
          %972 = vmatpush1.bf16.msra.mxu0 0
          %973 = vmatprep.mubr.bf16.mxu0 0
          %974 = vmatmul.mubr.bf16.gmra.mrb[0].mxu0 %v866
          %v975 = vpop.f32.mrb[0].mxu0
          %v976 = vadd.f32 %v891, %v975
          %v977 = vpop.f32.mrb[0].mxu0
          %v978 = vpop.f32.mrb[0].mxu0
          %v979 = vadd.f32 %v891, %v978
          %v980 = vpop.f32.mrb[0].mxu0
          %981 = vmatprep.mubr.bf16.mxu0 0
          %982 = vmatmul.mubr.bf16.gmra.mrb[0].mxu0 %v867
          %v983 = vpop.f32.mrb[0].mxu0
          %v984 = vadd.f32 %v891, %v983
          %v985 = vpop.f32.mrb[0].mxu0
          %v986 = vpop.f32.mrb[0].mxu0
          %v987 = vadd.f32 %v891, %v986
          %v988 = vpop.f32.mrb[0].mxu0
          %989 = vmatprep.mubr.bf16.mxu0 0
          %990 = vmatmul.mubr.bf16.gmra.mrb[0].mxu0 %v868
          %v991 = vpop.f32.mrb[0].mxu0
          %v992 = vadd.f32 %v891, %v991
          %v993 = vpop.f32.mrb[0].mxu0
          %v994 = vpop.f32.mrb[0].mxu0
          %v995 = vadd.f32 %v891, %v994
          %v996 = vpop.f32.mrb[0].mxu0
          %997 = vmatprep.mubr.bf16.mxu0 0
          %998 = vmatmul.mubr.bf16.gmra.mrb[0].mxu0 %v869
          %v999 = vpop.f32.mrb[0].mxu0
          %v1000 = vadd.f32 %v891, %v999
          %v1001 = vpop.f32.mrb[0].mxu0
          %v1002 = vpop.f32.mrb[0].mxu0
          %v1003 = vadd.f32 %v891, %v1002
          %v1004 = vpop.f32.mrb[0].mxu0
          %1005 = vdwg.mxu0
          %v1006 = vmax.f32 %v976, 0.0
          %v1007 = vmax.f32 %v979, 0.0
          %v1008 = vmax.f32 %v984, 0.0
          %v1009 = vmax.f32 %v987, 0.0
          %v1010 = vmax.f32 %v992, 0.0
          %v1011 = vmax.f32 %v995, 0.0
          %v1012 = vmax.f32 %v1000, 0.0
          %v1013 = vmax.f32 %v1003, 0.0
          %v1014 = vpack.c.bf16 %v1007, %v1006
          %v1015 = vpack.c.bf16 %v1009, %v1008
          %v1016 = vpack.c.bf16 %v1011, %v1010
          %v1017 = vpack.c.bf16 %v1013, %v1012
          %v1018 = vld [vmem:[#allocation9] sm:$0xf]
          %v1019 = vld [vmem:[#allocation9 + $0x4] sm:$0xf]
          %v1020 = vld [vmem:[#allocation9 + $0x8] sm:$0xf]
          %v1021 = vld [vmem:[#allocation9 + $0xc] sm:$0xf]
          %v1022 = vld [vmem:[#allocation9 + $0x10] sm:$0xf]
          %v1023 = vld [vmem:[#allocation9 + $0x14] sm:$0xf]
          %v1024 = vld [vmem:[#allocation9 + $0x18] sm:$0xf]
          %v1025 = vld [vmem:[#allocation9 + $0x1c] sm:$0xf]
          %v1026 = vld [vmem:[#allocation9 + $0x20] sm:$0xf]
          %v1027 = vld [vmem:[#allocation9 + $0x24] sm:$0xf]
          %v1028 = vld [vmem:[#allocation9 + $0x28] sm:$0xf]
          %v1029 = vld [vmem:[#allocation9 + $0x2c] sm:$0xf]
          %v1030 = vld [vmem:[#allocation9 + $0x30] sm:$0xf]
          %v1031 = vld [vmem:[#allocation9 + $0x34] sm:$0xf]
          %v1032 = vld [vmem:[#allocation9 + $0x38] sm:$0xf]
          %v1033 = vld [vmem:[#allocation9 + $0x3c] sm:$0xf]
          %v1034 = vld [vmem:[%s8] sm:$0x1]
          %v1036 = vlaneseq
          %v1037 = vshrl.u32 %v1036, 7
          %v1038 = vsub.s32 0, %v1037
          %v1039 = vrot.slane %v1034, %v1038
          %v1057 = vunpack.c.l.b16 %v1018
          %v1058 = vunpack.c.l.b16 %v1019
          %v1059 = vunpack.c.l.b16 %v1020
          %v1060 = vunpack.c.l.b16 %v1021
          %v1061 = vunpack.c.l.b16 %v1022
          %v1062 = vunpack.c.l.b16 %v1023
          %v1063 = vunpack.c.l.b16 %v1024
          %v1064 = vunpack.c.l.b16 %v1025
          %v1065 = vunpack.c.l.b16 %v1026
          %v1066 = vunpack.c.l.b16 %v1027
          %v1067 = vunpack.c.l.b16 %v1028
          %v1068 = vunpack.c.l.b16 %v1029
          %v1069 = vunpack.c.l.b16 %v1030
          %v1070 = vunpack.c.l.b16 %v1031
          %v1071 = vunpack.c.l.b16 %v1032
          %v1072 = vunpack.c.l.b16 %v1033
          %v1073 = vpack.c.b16 %v1058, %v1057
          %v1074 = vpack.c.b16 %v1060, %v1059
          %v1075 = vpack.c.b16 %v1062, %v1061
          %v1076 = vpack.c.b16 %v1064, %v1063
          %v1077 = vpack.c.b16 %v1066, %v1065
          %v1078 = vpack.c.b16 %v1068, %v1067
          %v1079 = vpack.c.b16 %v1070, %v1069
          %v1080 = vpack.c.b16 %v1072, %v1071
          %1089 = vmatprep.subr.bf16.mxu0 0
          %1090 = vmatpush1.bf16.msra.mxu0 %v1073
          %1091 = vmatprep.subr.bf16.mxu0 0
          %1092 = vmatpush1.bf16.msra.mxu0 %v1074
          %1093 = vmatprep.subr.bf16.mxu0 0
          %1094 = vmatpush1.bf16.msra.mxu0 %v1075
          %1095 = vmatprep.subr.bf16.mxu0 0
          %1096 = vmatpush1.bf16.msra.mxu0 %v1076
          %1097 = vmatprep.subr.bf16.mxu0 0
          %1098 = vmatpush1.bf16.msra.mxu0 %v1077
          %1099 = vmatprep.subr.bf16.mxu0 0
          %1100 = vmatpush1.bf16.msra.mxu0 %v1078
          %1101 = vmatprep.subr.bf16.mxu0 0
          %1102 = vmatpush1.bf16.msra.mxu0 %v1079
          %1103 = vmatprep.subr.bf16.mxu0 0
          %1104 = vmatpush1.bf16.msra.mxu0 %v1080
          %1105 = vmatprep.subr.bf16.mxu0 0
          %1106 = vmatpush1.bf16.msra.mxu0 0
          %1107 = vmatprep.subr.bf16.mxu0 0
          %1108 = vmatpush1.bf16.msra.mxu0 0
          %1109 = vmatprep.subr.bf16.mxu0 0
          %1110 = vmatpush1.bf16.msra.mxu0 0
          %1111 = vmatprep.subr.bf16.mxu0 0
          %1112 = vmatpush1.bf16.msra.mxu0 0
          %1113 = vmatprep.subr.bf16.mxu0 0
          %1114 = vmatpush1.bf16.msra.mxu0 0
          %1115 = vmatprep.subr.bf16.mxu0 0
          %1116 = vmatpush1.bf16.msra.mxu0 0
          %1117 = vmatprep.subr.bf16.mxu0 0
          %1118 = vmatpush1.bf16.msra.mxu0 0
          %1119 = vmatprep.subr.bf16.mxu0 0
          %1120 = vmatpush1.bf16.msra.mxu0 0
          %1121 = vmatprep.mubr.bf16.mxu0 0
          %1122 = vmatmul.mubr.bf16.gmra.mrb[0].mxu0 %v1014
          %v1123 = vpop.f32.mrb[0].mxu0
          %v1124 = vadd.f32 %v1039, %v1123
          %v1125 = vpop.f32.mrb[0].mxu0
          %v1126 = vpop.f32.mrb[0].mxu0
          %v1127 = vadd.f32 %v1039, %v1126
          %v1128 = vpop.f32.mrb[0].mxu0
          %1129 = vmatprep.mubr.bf16.mxu0 0
          %1130 = vmatmul.mubr.bf16.gmra.mrb[0].mxu0 %v1015
          %v1131 = vpop.f32.mrb[0].mxu0
          %v1132 = vadd.f32 %v1039, %v1131
          %v1133 = vpop.f32.mrb[0].mxu0
          %v1134 = vpop.f32.mrb[0].mxu0
          %v1135 = vadd.f32 %v1039, %v1134
          %v1136 = vpop.f32.mrb[0].mxu0
          %1137 = vmatprep.mubr.bf16.mxu0 0
          %1138 = vmatmul.mubr.bf16.gmra.mrb[0].mxu0 %v1016
          %v1139 = vpop.f32.mrb[0].mxu0
          %v1140 = vadd.f32 %v1039, %v1139
          %v1141 = vpop.f32.mrb[0].mxu0
          %v1142 = vpop.f32.mrb[0].mxu0
          %v1143 = vadd.f32 %v1039, %v1142
          %v1144 = vpop.f32.mrb[0].mxu0
          %1145 = vmatprep.mubr.bf16.mxu0 0
          %1146 = vmatmul.mubr.bf16.gmra.mrb[0].mxu0 %v1017
          %v1147 = vpop.f32.mrb[0].mxu0
          %v1148 = vadd.f32 %v1039, %v1147
          %v1149 = vpop.f32.mrb[0].mxu0
          %v1150 = vpop.f32.mrb[0].mxu0
          %v1151 = vadd.f32 %v1039, %v1150
          %v1152 = vpop.f32.mrb[0].mxu0
          %1153 = vdwg.mxu0
          %v1154 = vmax.f32 %v1124, 0.0
          %v1155 = vmax.f32 %v1127, 0.0
          %v1156 = vmax.f32 %v1132, 0.0
          %v1157 = vmax.f32 %v1135, 0.0
          %v1158 = vmax.f32 %v1140, 0.0
          %v1159 = vmax.f32 %v1143, 0.0
          %v1160 = vmax.f32 %v1148, 0.0
          %v1161 = vmax.f32 %v1151, 0.0
          %v1162 = vpack.c.bf16 %v1155, %v1154
          %v1163 = vpack.c.bf16 %v1157, %v1156
          %v1164 = vpack.c.bf16 %v1159, %v1158
          %v1165 = vpack.c.bf16 %v1161, %v1160
          %v1166 = vld [vmem:[#allocation11] sm:$0xf]
          %v1167 = vld [vmem:[#allocation11 + $0x4] sm:$0xf]
          %v1168 = vld [vmem:[#allocation11 + $0x8] sm:$0xf]
          %v1169 = vld [vmem:[#allocation11 + $0xc] sm:$0xf]
          %v1170 = vld [vmem:[#allocation11 + $0x10] sm:$0xf]
          %v1171 = vld [vmem:[#allocation11 + $0x14] sm:$0xf]
          %v1172 = vld [vmem:[#allocation11 + $0x18] sm:$0xf]
          %v1173 = vld [vmem:[#allocation11 + $0x1c] sm:$0xf]
          %v1174 = vld [vmem:[#allocation11 + $0x20] sm:$0xf]
          %v1175 = vld [vmem:[#allocation11 + $0x24] sm:$0xf]
          %v1176 = vld [vmem:[#allocation11 + $0x28] sm:$0xf]
          %v1177 = vld [vmem:[#allocation11 + $0x2c] sm:$0xf]
          %v1178 = vld [vmem:[#allocation11 + $0x30] sm:$0xf]
          %v1179 = vld [vmem:[#allocation11 + $0x34] sm:$0xf]
          %v1180 = vld [vmem:[#allocation11 + $0x38] sm:$0xf]
          %v1181 = vld [vmem:[#allocation11 + $0x3c] sm:$0xf]
          %v1182 = vld [vmem:[%s10] sm:$0x1]
          %v1184 = vlaneseq
          %v1185 = vshrl.u32 %v1184, 7
          %v1186 = vsub.s32 0, %v1185
          %v1187 = vrot.slane %v1182, %v1186
          %v1205 = vunpack.c.l.b16 %v1166
          %v1206 = vunpack.c.l.b16 %v1167
          %v1207 = vunpack.c.l.b16 %v1168
          %v1208 = vunpack.c.l.b16 %v1169
          %v1209 = vunpack.c.l.b16 %v1170
          %v1210 = vunpack.c.l.b16 %v1171
          %v1211 = vunpack.c.l.b16 %v1172
          %v1212 = vunpack.c.l.b16 %v1173
          %v1213 = vunpack.c.l.b16 %v1174
          %v1214 = vunpack.c.l.b16 %v1175
          %v1215 = vunpack.c.l.b16 %v1176
          %v1216 = vunpack.c.l.b16 %v1177
          %v1217 = vunpack.c.l.b16 %v1178
          %v1218 = vunpack.c.l.b16 %v1179
          %v1219 = vunpack.c.l.b16 %v1180
          %v1220 = vunpack.c.l.b16 %v1181
          %v1221 = vpack.c.b16 %v1206, %v1205
          %v1222 = vpack.c.b16 %v1208, %v1207
          %v1223 = vpack.c.b16 %v1210, %v1209
          %v1224 = vpack.c.b16 %v1212, %v1211
          %v1225 = vpack.c.b16 %v1214, %v1213
          %v1226 = vpack.c.b16 %v1216, %v1215
          %v1227 = vpack.c.b16 %v1218, %v1217
          %v1228 = vpack.c.b16 %v1220, %v1219
          %1237 = vmatprep.subr.bf16.mxu0 0
          %1238 = vmatpush1.bf16.msra.mxu0 %v1221
          %1239 = vmatprep.subr.bf16.mxu0 0
          %1240 = vmatpush1.bf16.msra.mxu0 %v1222
          %1241 = vmatprep.subr.bf16.mxu0 0
          %1242 = vmatpush1.bf16.msra.mxu0 %v1223
          %1243 = vmatprep.subr.bf16.mxu0 0
          %1244 = vmatpush1.bf16.msra.mxu0 %v1224
          %1245 = vmatprep.subr.bf16.mxu0 0
          %1246 = vmatpush1.bf16.msra.mxu0 %v1225
          %1247 = vmatprep.subr.bf16.mxu0 0
          %1248 = vmatpush1.bf16.msra.mxu0 %v1226
          %1249 = vmatprep.subr.bf16.mxu0 0
          %1250 = vmatpush1.bf16.msra.mxu0 %v1227
          %1251 = vmatprep.subr.bf16.mxu0 0
          %1252 = vmatpush1.bf16.msra.mxu0 %v1228
          %1253 = vmatprep.subr.bf16.mxu0 0
          %1254 = vmatpush1.bf16.msra.mxu0 0
          %1255 = vmatprep.subr.bf16.mxu0 0
          %1256 = vmatpush1.bf16.msra.mxu0 0
          %1257 = vmatprep.subr.bf16.mxu0 0
          %1258 = vmatpush1.bf16.msra.mxu0 0
          %1259 = vmatprep.subr.bf16.mxu0 0
          %1260 = vmatpush1.bf16.msra.mxu0 0
          %1261 = vmatprep.subr.bf16.mxu0 0
          %1262 = vmatpush1.bf16.msra.mxu0 0
          %1263 = vmatprep.subr.bf16.mxu0 0
          %1264 = vmatpush1.bf16.msra.mxu0 0
          %1265 = vmatprep.subr.bf16.mxu0 0
          %1266 = vmatpush1.bf16.msra.mxu0 0
          %1267 = vmatprep.subr.bf16.mxu0 0
          %1268 = vmatpush1.bf16.msra.mxu0 0
          %1269 = vmatprep.mubr.bf16.mxu0 0
          %1270 = vmatmul.mubr.bf16.gmra.mrb[0].mxu0 %v1162
          %v1271 = vpop.f32.mrb[0].mxu0
          %v1272 = vadd.f32 %v1187, %v1271
          %v1273 = vpop.f32.mrb[0].mxu0
          %v1274 = vpop.f32.mrb[0].mxu0
          %v1275 = vadd.f32 %v1187, %v1274
          %v1276 = vpop.f32.mrb[0].mxu0
          %1277 = vmatprep.mubr.bf16.mxu0 0
          %1278 = vmatmul.mubr.bf16.gmra.mrb[0].mxu0 %v1163
          %v1279 = vpop.f32.mrb[0].mxu0
          %v1280 = vadd.f32 %v1187, %v1279
          %v1281 = vpop.f32.mrb[0].mxu0
          %v1282 = vpop.f32.mrb[0].mxu0
          %v1283 = vadd.f32 %v1187, %v1282
          %v1284 = vpop.f32.mrb[0].mxu0
          %1285 = vmatprep.mubr.bf16.mxu0 0
          %1286 = vmatmul.mubr.bf16.gmra.mrb[0].mxu0 %v1164
          %v1287 = vpop.f32.mrb[0].mxu0
          %v1288 = vadd.f32 %v1187, %v1287
          %v1289 = vpop.f32.mrb[0].mxu0
          %v1290 = vpop.f32.mrb[0].mxu0
          %v1291 = vadd.f32 %v1187, %v1290
          %v1292 = vpop.f32.mrb[0].mxu0
          %1293 = vmatprep.mubr.bf16.mxu0 0
          %1294 = vmatmul.mubr.bf16.gmra.mrb[0].mxu0 %v1165
          %v1295 = vpop.f32.mrb[0].mxu0
          %v1296 = vadd.f32 %v1187, %v1295
          %v1297 = vpop.f32.mrb[0].mxu0
          %v1298 = vpop.f32.mrb[0].mxu0
          %v1299 = vadd.f32 %v1187, %v1298
          %v1300 = vpop.f32.mrb[0].mxu0
          %1301 = vdwg.mxu0
          %v1302 = vtanh.pop %v1272
          %v1303 = vtanh.pop %v1275
          %v1304 = vtanh.pop %v1280
          %v1305 = vtanh.pop %v1283
          %v1306 = vtanh.pop %v1288
          %v1307 = vtanh.pop %v1291
          %v1308 = vtanh.pop %v1296
          %v1309 = vtanh.pop %v1299
          %1310 = vst [vmem:[%s503] sm:$0xff] %v1302
          %1311 = vst [vmem:[%s503 + $0x8] sm:$0xff] %v1303
          %1312 = vst [vmem:[%s503 + $0x10] sm:$0xff] %v1304
          %1313 = vst [vmem:[%s503 + $0x18] sm:$0xff] %v1305
          %1314 = vst [vmem:[%s503 + $0x20] sm:$0xff] %v1306
          %1315 = vst [vmem:[%s503 + $0x28] sm:$0xff] %v1307
          %1316 = vst [vmem:[%s503 + $0x30] sm:$0xff] %v1308
          %1317 = vst [vmem:[%s503 + $0x38] sm:$0xff] %v1309
        $region92: #{tpu_custom_call.1} parent=63 // pred_fallthru
          _
        %s1318 = sand.u32 %s295, 1
        %s1319 = scalar_lea.sflag [#allocation5], %s1318
        %s1320 = sand.u32 %s295, 1
        %s1321 = smul.addr %s1320, 64
        %s1322 = scalar_lea.vmem [#allocation12], %s1321
        // Predicated region
        $region93: #{tpu_custom_call.1} parent=63 // pred_check
          %p1323 = pneg %p305
        $region94: #{tpu_custom_call.1} parent=63 // pred_check_branch
          %1325 = sbr.rel (%p1323) target = $region96
        $region95: #{tpu_custom_call.1} parent=63 // pred_region
          %s1326 = smul.u32 8, %s36
          %s1328 = ssub.s32 1024, 1024
          %1329 = vsyncadd %s1319, %s1328
          %s1330 = smul.addr %s1326, 128
          %s1331 = scalar_lea.hbm %s11, %s1330
          %s1332 = sshll.u32 %s1322, 4
          %s1333 = int_to_ptr.vmem [resolvable:$true] %s1332
          %1338 = dma.vmem_to_hbm [thread:$0]  %s1333, 1024, %s1331, %s1319, 128, 128, 8
        $region96: #{tpu_custom_call.1} parent=63 // pred_fallthru
          _
      $region64: #{tpu_custom_call.1} parent=5 // pred_fallthru
        _
      %p1339 = scmp.le.s32.totalorder 2, %s27
      // Predicated region
      $region97: #{tpu_custom_call.1} parent=5 // pred_check
        %p1340 = pneg %p1339
      $region98: #{tpu_custom_call.1} parent=5 // pred_check_branch
        %1342 = sbr.rel (%p1340) target = $region100
      $region99: #{tpu_custom_call.1} parent=5 // pred_region
        %s1343 = ssub.s32 %s27, 2
        // Predicated region
        $region101: #{tpu_custom_call.1} parent=99 // pred_check
          %p1344 = pneg %p311
        $region102: #{tpu_custom_call.1} parent=99 // pred_check_branch
          %1346 = sbr.rel (%p1344) target = $region104
        $region103: #{tpu_custom_call.1} parent=99 // pred_region
          %s1347 = sand.u32 %s296, 1
          %s1348 = scalar_lea.sflag [#allocation5], %s1347
          %s1349 = sand.u32 %s296, 1
          %s1350 = smul.addr %s1349, 64
          %s1351 = scalar_lea.vmem [#allocation12], %s1350
          %1352 = dma.done %s1348, 1024
        $region104: #{tpu_custom_call.1} parent=99 // pred_fallthru
          _
      $region100: #{tpu_custom_call.1} parent=5 // pred_fallthru
        _
    $region6: #{tpu_custom_call.1} parent=1 // loop_footer
      %s31 = sadd.s32 1, %s27
    $region7: #{tpu_custom_call.1} parent=1 // loop_footer_branch
      %26 = sbr.rel target = $region3
    $region8: #{tpu_custom_call.1} parent=1 // loop_exit
      _
    %1353 = vsyncpa [#allocation4], 1
    %s1354 = scalar_lea.sflag [#allocation4], 1
    %1355 = vsyncpa %s1354, 1
    %1356 = vsyncpa [#allocation7], 1
    %s1357 = scalar_lea.sflag [#allocation7], 1
    %1358 = vsyncpa %s1357, 1
    %1359 = vsyncpa [#allocation10], 1
    %1360 = vsyncpa [#allocation5], 1
    %s1361 = scalar_lea.sflag [#allocation5], 1
    %1362 = vsyncpa %s1361, 1

</llo_original>
